<compile_context>
chip_gen: v6e
topology: v6e:2x2x1
jax: 0.10.0
libtpu: 0.0.40
codegen_flags: <defaults>
</compile_context>

<pallas_src>
import functools

import jax
import jax.numpy as jnp
from jax.experimental import pallas as pl
from jax.experimental.pallas import tpu as pltpu

_EPS = 1e-5          # nn.LayerNorm default eps


def _layernorm(x, w, b):
    mu = jnp.mean(x, axis=-1, keepdims=True)
    var = jnp.mean((x - mu) ** 2, axis=-1, keepdims=True)
    return (x - mu) * jax.lax.rsqrt(var + _EPS) * w + b


def _gelu_tanh(x):
    # tanh-form GELU: the transcendental goes to the EUP slot instead of ~10
    # VALU ops on the widest (L, 4D) tensor.  Max |err| vs exact erf-GELU ~3e-4.
    c = 0.7978845608028654  # sqrt(2/pi)
    return 0.5 * x * (1.0 + jnp.tanh(c * (x + 0.044715 * x * x * x)))


def _block_kernel(q_ref, k_ref, v_ref,
                  ln1_w_ref, ln1_b_ref,
                  wqkv_ref,
                  ln2_w_ref, ln2_b_ref,
                  wfc_ref, bfc_ref, wproj_ref, bproj_ref,
                  o_ref, mha_ref, *, n_head, dhead):
    # Stack q/k/v on a new leading axis: one LayerNorm and one batched
    # projection issue instead of three of each.  The three (L, D) tiles land
    # at different sublane offsets of a (3, L, D) buffer -> no lane relayout.
    x = jnp.stack([q_ref[0], k_ref[0], v_ref[0]], axis=0)          # (3, L, D) f32

    # Shared mha_ln applied to q, k, v (f32 on the VPU).
    xn = _layernorm(x, ln1_w_ref[...], ln1_b_ref[...])
    qn = xn[0]                                                     # (L, D) f32

    # --- attention: batched q/k/v projection, bf16 on the MXU, f32 acc ---
    proj = jnp.einsum('xld,xdk->xlk',
                      xn.astype(jnp.bfloat16), wqkv_ref[...],
                      preferred_element_type=jnp.float32)          # (3, L, D) f32

    # Head-major stacks (H, L, dh): static lane slices + leading-dim stack.
    def split_heads(x2d):
        xb = x2d.astype(jnp.bfloat16)
        return jnp.stack(
            [xb[:, h * dhead:(h + 1) * dhead] for h in range(n_head)], axis=0)

    qh = split_heads(proj[0])                                      # (H, L, dh) bf16
    kh = split_heads(proj[1])
    vh = split_heads(proj[2])

    scale = 1.0 / (dhead ** 0.5)
    # One batched dot_general over the head axis (batch dim leading).
    s = jnp.einsum('hqd,hkd->hqk', qh, kh,
                   preferred_element_type=jnp.float32) * scale     # (H, L, L) f32
    s = s - jnp.max(s, axis=-1, keepdims=True)
    e = jnp.exp(s)
    attn = e * pl.reciprocal(jnp.sum(e, axis=-1, keepdims=True), approx=True)

    o_heads = jnp.einsum('hqk,hkd->hqd', attn.astype(jnp.bfloat16), vh,
                         preferred_element_type=jnp.float32)       # (H, L, dh) f32

    # Reassemble heads into (L, D) via a small VMEM scratch (sliced stores)
    # instead of a minor-dim concatenate.
    for h in range(n_head):
        mha_ref[:, h * dhead:(h + 1) * dhead] = o_heads[h]
    mha = mha_ref[...]                                             # (L, D) f32

    # residual 1 (residual is the LayerNormed q, exactly as in the PyTorch forward)
    x1 = qn + mha

    # --- FFN branch ---
    x2 = _layernorm(x1, ln2_w_ref[...], ln2_b_ref[...])
    hid = jnp.dot(x2.astype(jnp.bfloat16), wfc_ref[...],
                  preferred_element_type=jnp.float32) + bfc_ref[...]   # (L, 4D)
    hid = _gelu_tanh(hid)
    y = jnp.dot(hid.astype(jnp.bfloat16), wproj_ref[...],
                preferred_element_type=jnp.float32) + bproj_ref[...]   # (L, D)

    o_ref[0] = (x1 + y).astype(o_ref.dtype)


def block_forward(q, k, v, params):
    B, L, D = q.shape
    n_head = params["n_head"]
    dhead = D // n_head

    weight_names = ("ln1_w", "ln1_b", "wqkv",
                    "ln2_w", "ln2_b", "wfc", "bfc", "wproj", "bproj")
    weights = [params[n] for n in weight_names]

    seq_spec = pl.BlockSpec((1, L, D), lambda b: (b, 0, 0))

    # Constant index_map -> weights stay resident across the grid.  (If these
    # ever grow, mark them pipeline_mode=pl.Buffered(1) or load once into
    # scratch to avoid the default 2x double-buffer VMEM charge.)
    def full_spec(arr):
        ndim = arr.ndim
        return pl.BlockSpec(arr.shape, lambda b, _n=ndim: (0,) * _n)

    kernel = functools.partial(_block_kernel, n_head=n_head, dhead=dhead)

    return pl.pallas_call(
        kernel,
        out_shape=jax.ShapeDtypeStruct((B, L, D), jnp.float32),
        grid_spec=pltpu.PrefetchScalarGridSpec(
            num_scalar_prefetch=0,
            grid=(B,),
            in_specs=[seq_spec, seq_spec, seq_spec] + [full_spec(w) for w in weights],
            out_specs=seq_spec,
            scratch_shapes=[pltpu.VMEM((L, D), jnp.float32)],
        ),
        # "parallel" batch axis: on v7x the two TensorCores each take one b.
        compiler_params=pltpu.CompilerParams(dimension_semantics=("parallel",)),
    )(q, k, v, *weights)


def init_params(key, D, dhead):
    H = D // dhead
    ks = jax.random.split(key, 11)
    nrm = lambda kk, shape, s=0.1: (s * jax.random.normal(kk, shape)).astype(jnp.float32)

    wq = nrm(ks[0], (D, D))          # stored as (in, out): y = x @ wq
    wk = nrm(ks[1], (D, D))
    wv = nrm(ks[2], (D, D))
    ln1_w = 1.0 + nrm(ks[3], (D,))
    ln1_b = nrm(ks[4], (D,))
    ln2_w = 1.0 + nrm(ks[5], (D,))
    ln2_b = nrm(ks[6], (D,))
    wfc = nrm(ks[7], (D, 4 * D))
    bfc = nrm(ks[8], (4 * D,))
    wproj = nrm(ks[9], (4 * D, D))
    bproj = nrm(ks[10], (D,))

    bf = lambda x: x.astype(jnp.bfloat16)   # bf16 weights: MXU-native, half the DMA
    packed = dict(
        n_head=H,
        ln1_w=ln1_w.reshape(1, D), ln1_b=ln1_b.reshape(1, D),
        wqkv=bf(jnp.stack([wq, wk, wv], axis=0)),     # (3, D, D) single DMA
        ln2_w=ln2_w.reshape(1, D), ln2_b=ln2_b.reshape(1, D),
        wfc=bf(wfc), bfc=bfc.reshape(1, 4 * D),
        wproj=bf(wproj), bproj=bproj.reshape(1, D),
    )
    raw = dict(n_head=H, dhead=dhead, wq=wq, wk=wk, wv=wv,
               ln1_w=ln1_w, ln1_b=ln1_b, ln2_w=ln2_w, ln2_b=ln2_b,
               wfc=wfc, bfc=bfc, wproj=wproj, bproj=bproj)
    return packed, raw


def ref_block(q, k, v, raw, *, matmul_dtype=jnp.float32, tanh_gelu=False):
    """Plain-JAX reference mirroring the PyTorch forward.

    matmul_dtype=f32 + tanh_gelu=False  -> faithful to the f32 PyTorch module.
    matmul_dtype=bf16 + tanh_gelu=True  -> mirrors the kernel's numerics.
    """
    H, dh = raw["n_head"], raw["dhead"]
    B, L, D = q.shape
    md = matmul_dtype

    def ln(x, w, b):
        mu = x.mean(-1, keepdims=True)
        var = ((x - mu) ** 2).mean(-1, keepdims=True)
        return (x - mu) / jnp.sqrt(var + _EPS) * w + b

    def mm(a, b):
        return jnp.einsum('...ij,jk->...ik', a.astype(md), b.astype(md),
                          preferred_element_type=jnp.float32)

    qn = ln(q, raw["ln1_w"], raw["ln1_b"])
    kn = ln(k, raw["ln1_w"], raw["ln1_b"])
    vn = ln(v, raw["ln1_w"], raw["ln1_b"])

    qp = mm(qn, raw["wq"])
    kp = mm(kn, raw["wk"])
    vp = mm(vn, raw["wv"])
    qh = qp.reshape(B, L, H, dh).transpose(0, 2, 1, 3)
    kh = kp.reshape(B, L, H, dh).transpose(0, 2, 1, 3)
    vh = vp.reshape(B, L, H, dh).transpose(0, 2, 1, 3)
    s = jnp.einsum('bhqd,bhkd->bhqk', qh.astype(md), kh.astype(md),
                   preferred_element_type=jnp.float32) / dh ** 0.5
    attn = jax.nn.softmax(s, axis=-1)
    o = jnp.einsum('bhqk,bhkd->bhqd', attn.astype(md), vh.astype(md),
                   preferred_element_type=jnp.float32)
    o = o.transpose(0, 2, 1, 3).reshape(B, L, D)

    x1 = qn + o
    x2 = ln(x1, raw["ln2_w"], raw["ln2_b"])
    hid = mm(x2, raw["wfc"]) + raw["bfc"]
    hid = jax.nn.gelu(hid, approximate=tanh_gelu)
    y = mm(hid, raw["wproj"]) + raw["bproj"]
    return x1 + y


if __name__ == "__main__":
    B, L, D, dhead = 2, 8, 32, 8    # n_head = 4, ffn hidden = 128

    key = jax.random.PRNGKey(0)
    kq, kk, kv, kp = jax.random.split(key, 4)
    q = jax.random.normal(kq, (B, L, D), jnp.float32)
    k = jax.random.normal(kk, (B, L, D), jnp.float32)
    v = jax.random.normal(kv, (B, L, D), jnp.float32)

    params, raw = init_params(kp, D, dhead)

    out = jax.block_until_ready(block_forward(q, k, v, params))

    # Tight check against a reference that mirrors the kernel's bf16/tanh-GELU
    # numerics (isolates structural bugs), plus a sanity check against the
    # fully-f32, exact-GELU PyTorch-equivalent forward.
    ref_mirror = ref_block(q, k, v, raw, matmul_dtype=jnp.bfloat16, tanh_gelu=True)
    ref_f32 = ref_block(q, k, v, raw)
    err_mirror = float(jnp.max(jnp.abs(out - ref_mirror)))
    err_f32 = float(jnp.max(jnp.abs(out - ref_f32)))
    assert err_mirror < 1e-2, f"kernel vs bf16-mirror reference mismatch: {err_mirror}"
    assert err_f32 < 6e-2, f"kernel vs f32 reference mismatch: {err_f32}"
    print("KERNEL_OK")
</pallas_src>

<mosaic_0001>
module attributes {stable_mosaic.version = 11 : i64} {
  func.func @_block_kernel(%arg0: i32, %arg1: memref<1x8x32xf32, #tpu.memory_space<vmem>>, %arg2: memref<1x8x32xf32, #tpu.memory_space<vmem>>, %arg3: memref<1x8x32xf32, #tpu.memory_space<vmem>>, %arg4: memref<1x32xf32, #tpu.memory_space<vmem>>, %arg5: memref<1x32xf32, #tpu.memory_space<vmem>>, %arg6: memref<3x32x32xbf16, #tpu.memory_space<vmem>>, %arg7: memref<1x32xf32, #tpu.memory_space<vmem>>, %arg8: memref<1x32xf32, #tpu.memory_space<vmem>>, %arg9: memref<32x128xbf16, #tpu.memory_space<vmem>>, %arg10: memref<1x128xf32, #tpu.memory_space<vmem>>, %arg11: memref<128x32xbf16, #tpu.memory_space<vmem>>, %arg12: memref<1x32xf32, #tpu.memory_space<vmem>>, %arg13: memref<1x8x32xf32, #tpu.memory_space<vmem>>, %arg14: memref<8x32xf32, #tpu.memory_space<vmem>>) attributes {dimension_semantics = [#tpu.dimension_semantics<parallel>], iteration_bounds = array<i64: 2>, scalar_prefetch = 0 : i64, scratch_operands = 1 : i64, tpu.core_type = #tpu.core_type<tc>, window_params = [{transform_indices = @transform_0, window_bounds = array<i64: 1, 8, 32>}, {transform_indices = @transform_1, window_bounds = array<i64: 1, 8, 32>}, {transform_indices = @transform_2, window_bounds = array<i64: 1, 8, 32>}, {pipeline_mode = #tpu.pipeline_mode<synchronous>, transform_indices = @transform_3, window_bounds = array<i64: 1, 32>}, {pipeline_mode = #tpu.pipeline_mode<synchronous>, transform_indices = @transform_4, window_bounds = array<i64: 1, 32>}, {pipeline_mode = #tpu.pipeline_mode<synchronous>, transform_indices = @transform_5, window_bounds = array<i64: 3, 32, 32>}, {pipeline_mode = #tpu.pipeline_mode<synchronous>, transform_indices = @transform_6, window_bounds = array<i64: 1, 32>}, {pipeline_mode = #tpu.pipeline_mode<synchronous>, transform_indices = @transform_7, window_bounds = array<i64: 1, 32>}, {pipeline_mode = #tpu.pipeline_mode<synchronous>, transform_indices = @transform_8, window_bounds = array<i64: 32, 128>}, {pipeline_mode = #tpu.pipeline_mode<synchronous>, transform_indices = @transform_9, window_bounds = array<i64: 1, 128>}, {pipeline_mode = #tpu.pipeline_mode<synchronous>, transform_indices = @transform_10, window_bounds = array<i64: 128, 32>}, {pipeline_mode = #tpu.pipeline_mode<synchronous>, transform_indices = @transform_11, window_bounds = array<i64: 1, 32>}, {transform_indices = @transform_12, window_bounds = array<i64: 1, 8, 32>}]} {
    %c0 = arith.constant 0 : index
    %c0_0 = arith.constant 0 : index
    %c0_1 = arith.constant 0 : index
    %0 = vector.load %arg1[%c0, %c0_0, %c0_1] : memref<1x8x32xf32, #tpu.memory_space<vmem>>, vector<1x8x32xf32>
    %1 = vector.shape_cast %0 : vector<1x8x32xf32> to vector<8x32xf32>
    %c0_2 = arith.constant 0 : index
    %c0_3 = arith.constant 0 : index
    %c0_4 = arith.constant 0 : index
    %2 = vector.load %arg2[%c0_2, %c0_3, %c0_4] : memref<1x8x32xf32, #tpu.memory_space<vmem>>, vector<1x8x32xf32>
    %3 = vector.shape_cast %2 : vector<1x8x32xf32> to vector<8x32xf32>
    %c0_5 = arith.constant 0 : index
    %c0_6 = arith.constant 0 : index
    %c0_7 = arith.constant 0 : index
    %4 = vector.load %arg3[%c0_5, %c0_6, %c0_7] : memref<1x8x32xf32, #tpu.memory_space<vmem>>, vector<1x8x32xf32>
    %5 = vector.shape_cast %4 : vector<1x8x32xf32> to vector<8x32xf32>
    %6 = vector.shape_cast %1 : vector<8x32xf32> to vector<1x8x32xf32>
    %7 = vector.shape_cast %3 : vector<8x32xf32> to vector<1x8x32xf32>
    %8 = vector.shape_cast %5 : vector<8x32xf32> to vector<1x8x32xf32>
    %9 = tpu.concatenate %6, %7, %8 in 0 : vector<1x8x32xf32>, vector<1x8x32xf32>, vector<1x8x32xf32> -> vector<3x8x32xf32>
    %c0_8 = arith.constant 0 : index
    %c0_9 = arith.constant 0 : index
    %10 = vector.load %arg4[%c0_8, %c0_9] : memref<1x32xf32, #tpu.memory_space<vmem>>, vector<1x32xf32>
    %c0_10 = arith.constant 0 : index
    %c0_11 = arith.constant 0 : index
    %11 = vector.load %arg5[%c0_10, %c0_11] : memref<1x32xf32, #tpu.memory_space<vmem>>, vector<1x32xf32>
    %cst = arith.constant dense<0.000000e+00> : vector<3x8xf32>
    %12 = vector.multi_reduction <add>, %9, %cst [2] : vector<3x8x32xf32> to vector<3x8xf32>
    %13 = vector.shape_cast %12 : vector<3x8xf32> to vector<3x8x1xf32>
    %cst_12 = arith.constant 3.200000e+01 : f32
    %14 = vector.broadcast %cst_12 : f32 to vector<3x8x1xf32>
    %15 = arith.divf %13, %14 : vector<3x8x1xf32>
    %16 = vector.broadcast %15 : vector<3x8x1xf32> to vector<3x8x32xf32>
    %17 = arith.subf %9, %16 : vector<3x8x32xf32>
    %18 = arith.mulf %17, %17 : vector<3x8x32xf32>
    %cst_13 = arith.constant dense<0.000000e+00> : vector<3x8xf32>
    %19 = vector.multi_reduction <add>, %18, %cst_13 [2] : vector<3x8x32xf32> to vector<3x8xf32>
    %20 = vector.shape_cast %19 : vector<3x8xf32> to vector<3x8x1xf32>
    %cst_14 = arith.constant 3.200000e+01 : f32
    %21 = vector.broadcast %cst_14 : f32 to vector<3x8x1xf32>
    %22 = arith.divf %20, %21 : vector<3x8x1xf32>
    %23 = vector.broadcast %15 : vector<3x8x1xf32> to vector<3x8x32xf32>
    %24 = arith.subf %9, %23 : vector<3x8x32xf32>
    %cst_15 = arith.constant 9.99999974E-6 : f32
    %25 = vector.broadcast %cst_15 : f32 to vector<3x8x1xf32>
    %26 = arith.addf %22, %25 : vector<3x8x1xf32>
    %27 = math.rsqrt %26 : vector<3x8x1xf32>
    %28 = vector.broadcast %27 : vector<3x8x1xf32> to vector<3x8x32xf32>
    %29 = arith.mulf %24, %28 : vector<3x8x32xf32>
    %30 = vector.shape_cast %10 : vector<1x32xf32> to vector<1x1x32xf32>
    %31 = vector.broadcast %30 : vector<1x1x32xf32> to vector<3x8x32xf32>
    %32 = arith.mulf %29, %31 : vector<3x8x32xf32>
    %33 = vector.shape_cast %11 : vector<1x32xf32> to vector<1x1x32xf32>
    %34 = vector.broadcast %33 : vector<1x1x32xf32> to vector<3x8x32xf32>
    %35 = arith.addf %32, %34 : vector<3x8x32xf32>
    %36 = vector.extract_strided_slice %35 {offsets = [0, 0, 0], sizes = [1, 8, 32], strides = [1, 1, 1]} : vector<3x8x32xf32> to vector<1x8x32xf32>
    %37 = vector.shape_cast %36 : vector<1x8x32xf32> to vector<8x32xf32>
    %38 = arith.truncf %35 : vector<3x8x32xf32> to vector<3x8x32xbf16>
    %c0_16 = arith.constant 0 : index
    %c0_17 = arith.constant 0 : index
    %c0_18 = arith.constant 0 : index
    %39 = vector.load %arg6[%c0_16, %c0_17, %c0_18] : memref<3x32x32xbf16, #tpu.memory_space<vmem>>, vector<3x32x32xbf16>
    "tpu.trace_start"() <{level = 10 : i32, message = "xld,xdk->xlk"}> : () -> ()
    %cst_19 = arith.constant dense<0.000000e+00> : vector<3x8x32xf32>
    %40 = tpu.matmul %38, %39, %cst_19 {dimension_numbers = #tpu.dot_dimension_numbers<[2], [1], [1], [2], [0, 0, 0, 1, 1, 2], [0], [0]>} : vector<3x8x32xbf16>, vector<3x32x32xbf16>, vector<3x8x32xf32> -> vector<3x8x32xf32>
    "tpu.trace_stop"() : () -> ()
    %41 = vector.extract_strided_slice %40 {offsets = [0, 0, 0], sizes = [1, 8, 32], strides = [1, 1, 1]} : vector<3x8x32xf32> to vector<1x8x32xf32>
    %42 = vector.shape_cast %41 : vector<1x8x32xf32> to vector<8x32xf32>
    %43 = arith.truncf %42 : vector<8x32xf32> to vector<8x32xbf16>
    %44 = vector.extract_strided_slice %43 {offsets = [0, 0], sizes = [8, 8], strides = [1, 1]} : vector<8x32xbf16> to vector<8x8xbf16>
    %45 = vector.extract_strided_slice %43 {offsets = [0, 8], sizes = [8, 8], strides = [1, 1]} : vector<8x32xbf16> to vector<8x8xbf16>
    %46 = vector.extract_strided_slice %43 {offsets = [0, 16], sizes = [8, 8], strides = [1, 1]} : vector<8x32xbf16> to vector<8x8xbf16>
    %47 = vector.extract_strided_slice %43 {offsets = [0, 24], sizes = [8, 8], strides = [1, 1]} : vector<8x32xbf16> to vector<8x8xbf16>
    %48 = vector.shape_cast %44 : vector<8x8xbf16> to vector<1x8x8xbf16>
    %49 = vector.shape_cast %45 : vector<8x8xbf16> to vector<1x8x8xbf16>
    %50 = vector.shape_cast %46 : vector<8x8xbf16> to vector<1x8x8xbf16>
    %51 = vector.shape_cast %47 : vector<8x8xbf16> to vector<1x8x8xbf16>
    %52 = tpu.concatenate %48, %49, %50, %51 in 0 : vector<1x8x8xbf16>, vector<1x8x8xbf16>, vector<1x8x8xbf16>, vector<1x8x8xbf16> -> vector<4x8x8xbf16>
    %53 = vector.extract_strided_slice %40 {offsets = [1, 0, 0], sizes = [1, 8, 32], strides = [1, 1, 1]} : vector<3x8x32xf32> to vector<1x8x32xf32>
    %54 = vector.shape_cast %53 : vector<1x8x32xf32> to vector<8x32xf32>
    %55 = arith.truncf %54 : vector<8x32xf32> to vector<8x32xbf16>
    %56 = vector.extract_strided_slice %55 {offsets = [0, 0], sizes = [8, 8], strides = [1, 1]} : vector<8x32xbf16> to vector<8x8xbf16>
    %57 = vector.extract_strided_slice %55 {offsets = [0, 8], sizes = [8, 8], strides = [1, 1]} : vector<8x32xbf16> to vector<8x8xbf16>
    %58 = vector.extract_strided_slice %55 {offsets = [0, 16], sizes = [8, 8], strides = [1, 1]} : vector<8x32xbf16> to vector<8x8xbf16>
    %59 = vector.extract_strided_slice %55 {offsets = [0, 24], sizes = [8, 8], strides = [1, 1]} : vector<8x32xbf16> to vector<8x8xbf16>
    %60 = vector.shape_cast %56 : vector<8x8xbf16> to vector<1x8x8xbf16>
    %61 = vector.shape_cast %57 : vector<8x8xbf16> to vector<1x8x8xbf16>
    %62 = vector.shape_cast %58 : vector<8x8xbf16> to vector<1x8x8xbf16>
    %63 = vector.shape_cast %59 : vector<8x8xbf16> to vector<1x8x8xbf16>
    %64 = tpu.concatenate %60, %61, %62, %63 in 0 : vector<1x8x8xbf16>, vector<1x8x8xbf16>, vector<1x8x8xbf16>, vector<1x8x8xbf16> -> vector<4x8x8xbf16>
    %65 = vector.extract_strided_slice %40 {offsets = [2, 0, 0], sizes = [1, 8, 32], strides = [1, 1, 1]} : vector<3x8x32xf32> to vector<1x8x32xf32>
    %66 = vector.shape_cast %65 : vector<1x8x32xf32> to vector<8x32xf32>
    %67 = arith.truncf %66 : vector<8x32xf32> to vector<8x32xbf16>
    %68 = vector.extract_strided_slice %67 {offsets = [0, 0], sizes = [8, 8], strides = [1, 1]} : vector<8x32xbf16> to vector<8x8xbf16>
    %69 = vector.extract_strided_slice %67 {offsets = [0, 8], sizes = [8, 8], strides = [1, 1]} : vector<8x32xbf16> to vector<8x8xbf16>
    %70 = vector.extract_strided_slice %67 {offsets = [0, 16], sizes = [8, 8], strides = [1, 1]} : vector<8x32xbf16> to vector<8x8xbf16>
    %71 = vector.extract_strided_slice %67 {offsets = [0, 24], sizes = [8, 8], strides = [1, 1]} : vector<8x32xbf16> to vector<8x8xbf16>
    %72 = vector.shape_cast %68 : vector<8x8xbf16> to vector<1x8x8xbf16>
    %73 = vector.shape_cast %69 : vector<8x8xbf16> to vector<1x8x8xbf16>
    %74 = vector.shape_cast %70 : vector<8x8xbf16> to vector<1x8x8xbf16>
    %75 = vector.shape_cast %71 : vector<8x8xbf16> to vector<1x8x8xbf16>
    %76 = tpu.concatenate %72, %73, %74, %75 in 0 : vector<1x8x8xbf16>, vector<1x8x8xbf16>, vector<1x8x8xbf16>, vector<1x8x8xbf16> -> vector<4x8x8xbf16>
    "tpu.trace_start"() <{level = 10 : i32, message = "hqd,hkd->hqk"}> : () -> ()
    %cst_20 = arith.constant dense<0.000000e+00> : vector<4x8x8xf32>
    %77 = tpu.matmul %52, %64, %cst_20 {dimension_numbers = #tpu.dot_dimension_numbers<[2], [2], [1], [1], [0, 0, 0, 1, 1, 1], [0], [0]>} : vector<4x8x8xbf16>, vector<4x8x8xbf16>, vector<4x8x8xf32> -> vector<4x8x8xf32>
    "tpu.trace_stop"() : () -> ()
    %cst_21 = arith.constant 0.353553385 : f32
    %78 = vector.broadcast %cst_21 : f32 to vector<4x8x8xf32>
    %79 = arith.mulf %77, %78 : vector<4x8x8xf32>
    %cst_22 = arith.constant dense<0xFF800000> : vector<4x8xf32>
    %80 = vector.multi_reduction <maximumf>, %79, %cst_22 [2] : vector<4x8x8xf32> to vector<4x8xf32>
    %81 = vector.shape_cast %80 : vector<4x8xf32> to vector<4x8x1xf32>
    %82 = vector.broadcast %81 : vector<4x8x1xf32> to vector<4x8x8xf32>
    %83 = arith.subf %79, %82 : vector<4x8x8xf32>
    %84 = math.exp %83 : vector<4x8x8xf32>
    %cst_23 = arith.constant dense<0.000000e+00> : vector<4x8xf32>
    %85 = vector.multi_reduction <add>, %84, %cst_23 [2] : vector<4x8x8xf32> to vector<4x8xf32>
    %86 = vector.shape_cast %85 : vector<4x8xf32> to vector<4x8x1xf32>
    %87 = tpu.reciprocal %86 {approx = true} : vector<4x8x1xf32> -> vector<4x8x1xf32>
    %88 = vector.broadcast %87 : vector<4x8x1xf32> to vector<4x8x8xf32>
    %89 = arith.mulf %84, %88 : vector<4x8x8xf32>
    %90 = arith.truncf %89 : vector<4x8x8xf32> to vector<4x8x8xbf16>
    "tpu.trace_start"() <{level = 10 : i32, message = "hqk,hkd->hqd"}> : () -> ()
    %cst_24 = arith.constant dense<0.000000e+00> : vector<4x8x8xf32>
    %91 = tpu.matmul %90, %76, %cst_24 {dimension_numbers = #tpu.dot_dimension_numbers<[2], [1], [1], [2], [0, 0, 0, 1, 1, 2], [0], [0]>} : vector<4x8x8xbf16>, vector<4x8x8xbf16>, vector<4x8x8xf32> -> vector<4x8x8xf32>
    "tpu.trace_stop"() : () -> ()
    %92 = vector.extract_strided_slice %91 {offsets = [0, 0, 0], sizes = [1, 8, 8], strides = [1, 1, 1]} : vector<4x8x8xf32> to vector<1x8x8xf32>
    %93 = vector.shape_cast %92 : vector<1x8x8xf32> to vector<8x8xf32>
    %c0_25 = arith.constant 0 : index
    %c0_26 = arith.constant 0 : index
    %94 = vector.load %arg14[%c0_25, %c0_26] : memref<8x32xf32, #tpu.memory_space<vmem>>, vector<8x8xf32>
    tpu.vector_store %arg14[%c0_25, %c0_26], %93 {strides = array<i32>} : memref<8x32xf32, #tpu.memory_space<vmem>>, vector<8x8xf32>,
    %95 = vector.extract_strided_slice %91 {offsets = [1, 0, 0], sizes = [1, 8, 8], strides = [1, 1, 1]} : vector<4x8x8xf32> to vector<1x8x8xf32>
    %96 = vector.shape_cast %95 : vector<1x8x8xf32> to vector<8x8xf32>
    %c0_27 = arith.constant 0 : index
    %c8 = arith.constant 8 : index
    %97 = vector.load %arg14[%c0_27, %c8] : memref<8x32xf32, #tpu.memory_space<vmem>>, vector<8x8xf32>
    tpu.vector_store %arg14[%c0_27, %c8], %96 {strides = array<i32>} : memref<8x32xf32, #tpu.memory_space<vmem>>, vector<8x8xf32>,
    %98 = vector.extract_strided_slice %91 {offsets = [2, 0, 0], sizes = [1, 8, 8], strides = [1, 1, 1]} : vector<4x8x8xf32> to vector<1x8x8xf32>
    %99 = vector.shape_cast %98 : vector<1x8x8xf32> to vector<8x8xf32>
    %c0_28 = arith.constant 0 : index
    %c16 = arith.constant 16 : index
    %100 = vector.load %arg14[%c0_28, %c16] : memref<8x32xf32, #tpu.memory_space<vmem>>, vector<8x8xf32>
    tpu.vector_store %arg14[%c0_28, %c16], %99 {strides = array<i32>} : memref<8x32xf32, #tpu.memory_space<vmem>>, vector<8x8xf32>,
    %101 = vector.extract_strided_slice %91 {offsets = [3, 0, 0], sizes = [1, 8, 8], strides = [1, 1, 1]} : vector<4x8x8xf32> to vector<1x8x8xf32>
    %102 = vector.shape_cast %101 : vector<1x8x8xf32> to vector<8x8xf32>
    %c0_29 = arith.constant 0 : index
    %c24 = arith.constant 24 : index
    %103 = vector.load %arg14[%c0_29, %c24] : memref<8x32xf32, #tpu.memory_space<vmem>>, vector<8x8xf32>
    tpu.vector_store %arg14[%c0_29, %c24], %102 {strides = array<i32>} : memref<8x32xf32, #tpu.memory_space<vmem>>, vector<8x8xf32>,
    %c0_30 = arith.constant 0 : index
    %c0_31 = arith.constant 0 : index
    %104 = vector.load %arg14[%c0_30, %c0_31] : memref<8x32xf32, #tpu.memory_space<vmem>>, vector<8x32xf32>
    %105 = arith.addf %37, %104 : vector<8x32xf32>
    %c0_32 = arith.constant 0 : index
    %c0_33 = arith.constant 0 : index
    %106 = vector.load %arg7[%c0_32, %c0_33] : memref<1x32xf32, #tpu.memory_space<vmem>>, vector<1x32xf32>
    %c0_34 = arith.constant 0 : index
    %c0_35 = arith.constant 0 : index
    %107 = vector.load %arg8[%c0_34, %c0_35] : memref<1x32xf32, #tpu.memory_space<vmem>>, vector<1x32xf32>
    %cst_36 = arith.constant dense<0.000000e+00> : vector<8xf32>
    %108 = vector.multi_reduction <add>, %105, %cst_36 [1] : vector<8x32xf32> to vector<8xf32>
    %109 = vector.shape_cast %108 : vector<8xf32> to vector<8x1xf32>
    %cst_37 = arith.constant 3.200000e+01 : f32
    %110 = vector.broadcast %cst_37 : f32 to vector<8x1xf32>
    %111 = arith.divf %109, %110 : vector<8x1xf32>
    %112 = vector.broadcast %111 : vector<8x1xf32> to vector<8x32xf32>
    %113 = arith.subf %105, %112 : vector<8x32xf32>
    %114 = arith.mulf %113, %113 : vector<8x32xf32>
    %cst_38 = arith.constant dense<0.000000e+00> : vector<8xf32>
    %115 = vector.multi_reduction <add>, %114, %cst_38 [1] : vector<8x32xf32> to vector<8xf32>
    %116 = vector.shape_cast %115 : vector<8xf32> to vector<8x1xf32>
    %cst_39 = arith.constant 3.200000e+01 : f32
    %117 = vector.broadcast %cst_39 : f32 to vector<8x1xf32>
    %118 = arith.divf %116, %117 : vector<8x1xf32>
    %119 = vector.broadcast %111 : vector<8x1xf32> to vector<8x32xf32>
    %120 = arith.subf %105, %119 : vector<8x32xf32>
    %cst_40 = arith.constant 9.99999974E-6 : f32
    %121 = vector.broadcast %cst_40 : f32 to vector<8x1xf32>
    %122 = arith.addf %118, %121 : vector<8x1xf32>
    %123 = math.rsqrt %122 : vector<8x1xf32>
    %124 = vector.broadcast %123 : vector<8x1xf32> to vector<8x32xf32>
    %125 = arith.mulf %120, %124 : vector<8x32xf32>
    %126 = vector.broadcast %106 : vector<1x32xf32> to vector<8x32xf32>
    %127 = arith.mulf %125, %126 : vector<8x32xf32>
    %128 = vector.broadcast %107 : vector<1x32xf32> to vector<8x32xf32>
    %129 = arith.addf %127, %128 : vector<8x32xf32>
    %130 = arith.truncf %129 : vector<8x32xf32> to vector<8x32xbf16>
    %c0_41 = arith.constant 0 : index
    %c0_42 = arith.constant 0 : index
    %131 = vector.load %arg9[%c0_41, %c0_42] : memref<32x128xbf16, #tpu.memory_space<vmem>>, vector<32x128xbf16>
    %cst_43 = arith.constant dense<0.000000e+00> : vector<8x128xf32>
    %132 = tpu.matmul %130, %131, %cst_43 {dimension_numbers = #tpu.dot_dimension_numbers<[1], [0], [0], [1], [0, 0, 1, 1], [], []>} : vector<8x32xbf16>, vector<32x128xbf16>, vector<8x128xf32> -> vector<8x128xf32>
    %c0_44 = arith.constant 0 : index
    %c0_45 = arith.constant 0 : index
    %133 = vector.load %arg10[%c0_44, %c0_45] : memref<1x128xf32, #tpu.memory_space<vmem>>, vector<1x128xf32>
    %134 = vector.broadcast %133 : vector<1x128xf32> to vector<8x128xf32>
    %135 = arith.addf %132, %134 : vector<8x128xf32>
    %cst_46 = arith.constant 5.000000e-01 : f32
    %136 = vector.broadcast %cst_46 : f32 to vector<8x128xf32>
    %137 = arith.mulf %136, %135 : vector<8x128xf32>
    %cst_47 = arith.constant 4.471500e-02 : f32
    %138 = vector.broadcast %cst_47 : f32 to vector<8x128xf32>
    %139 = arith.mulf %138, %135 : vector<8x128xf32>
    %140 = arith.mulf %139, %135 : vector<8x128xf32>
    %141 = arith.mulf %140, %135 : vector<8x128xf32>
    %142 = arith.addf %135, %141 : vector<8x128xf32>
    %cst_48 = arith.constant 0.797884583 : f32
    %143 = vector.broadcast %cst_48 : f32 to vector<8x128xf32>
    %144 = arith.mulf %143, %142 : vector<8x128xf32>
    %145 = math.tanh %144 : vector<8x128xf32>
    %cst_49 = arith.constant 1.000000e+00 : f32
    %146 = vector.broadcast %cst_49 : f32 to vector<8x128xf32>
    %147 = arith.addf %146, %145 : vector<8x128xf32>
    %148 = arith.mulf %137, %147 : vector<8x128xf32>
    %149 = arith.truncf %148 : vector<8x128xf32> to vector<8x128xbf16>
    %c0_50 = arith.constant 0 : index
    %c0_51 = arith.constant 0 : index
    %150 = vector.load %arg11[%c0_50, %c0_51] : memref<128x32xbf16, #tpu.memory_space<vmem>>, vector<128x32xbf16>
    %cst_52 = arith.constant dense<0.000000e+00> : vector<8x32xf32>
    %151 = tpu.matmul %149, %150, %cst_52 {dimension_numbers = #tpu.dot_dimension_numbers<[1], [0], [0], [1], [0, 0, 1, 1], [], []>} : vector<8x128xbf16>, vector<128x32xbf16>, vector<8x32xf32> -> vector<8x32xf32>
    %c0_53 = arith.constant 0 : index
    %c0_54 = arith.constant 0 : index
    %152 = vector.load %arg12[%c0_53, %c0_54] : memref<1x32xf32, #tpu.memory_space<vmem>>, vector<1x32xf32>
    %153 = vector.broadcast %152 : vector<1x32xf32> to vector<8x32xf32>
    %154 = arith.addf %151, %153 : vector<8x32xf32>
    %155 = arith.addf %105, %154 : vector<8x32xf32>
    %c0_55 = arith.constant 0 : index
    %c0_56 = arith.constant 0 : index
    %c0_57 = arith.constant 0 : index
    %156 = vector.load %arg13[%c0_55, %c0_56, %c0_57] : memref<1x8x32xf32, #tpu.memory_space<vmem>>, vector<1x8x32xf32>
    %157 = vector.shape_cast %156 : vector<1x8x32xf32> to vector<8x32xf32>
    %158 = vector.shape_cast %155 : vector<8x32xf32> to vector<1x8x32xf32>
    tpu.vector_store %arg13[%c0_55, %c0_56, %c0_57], %158 {strides = array<i32>} : memref<1x8x32xf32, #tpu.memory_space<vmem>>, vector<1x8x32xf32>,
    return
  }
  func.func @transform_0(%arg0: i32) -> (i32, i32, i32) {
    %c0_i32 = arith.constant 0 : i32
    %c0_i32_0 = arith.constant 0 : i32
    %c0_i32_1 = arith.constant 0 : i32
    return %arg0, %c0_i32, %c0_i32_0 : i32, i32, i32
  }
  func.func @transform_1(%arg0: i32) -> (i32, i32, i32) {
    %c0_i32 = arith.constant 0 : i32
    %c0_i32_0 = arith.constant 0 : i32
    %c0_i32_1 = arith.constant 0 : i32
    return %arg0, %c0_i32, %c0_i32_0 : i32, i32, i32
  }
  func.func @transform_2(%arg0: i32) -> (i32, i32, i32) {
    %c0_i32 = arith.constant 0 : i32
    %c0_i32_0 = arith.constant 0 : i32
    %c0_i32_1 = arith.constant 0 : i32
    return %arg0, %c0_i32, %c0_i32_0 : i32, i32, i32
  }
  func.func @transform_3(%arg0: i32) -> (i32, i32) {
    %c0_i32 = arith.constant 0 : i32
    %c0_i32_0 = arith.constant 0 : i32
    %c0_i32_1 = arith.constant 0 : i32
    return %c0_i32, %c0_i32_0 : i32, i32
  }
  func.func @transform_4(%arg0: i32) -> (i32, i32) {
    %c0_i32 = arith.constant 0 : i32
    %c0_i32_0 = arith.constant 0 : i32
    %c0_i32_1 = arith.constant 0 : i32
    return %c0_i32, %c0_i32_0 : i32, i32
  }
  func.func @transform_5(%arg0: i32) -> (i32, i32, i32) {
    %c0_i32 = arith.constant 0 : i32
    %c0_i32_0 = arith.constant 0 : i32
    %c0_i32_1 = arith.constant 0 : i32
    %c0_i32_2 = arith.constant 0 : i32
    return %c0_i32, %c0_i32_0, %c0_i32_1 : i32, i32, i32
  }
  func.func @transform_6(%arg0: i32) -> (i32, i32) {
    %c0_i32 = arith.constant 0 : i32
    %c0_i32_0 = arith.constant 0 : i32
    %c0_i32_1 = arith.constant 0 : i32
    return %c0_i32, %c0_i32_0 : i32, i32
  }
  func.func @transform_7(%arg0: i32) -> (i32, i32) {
    %c0_i32 = arith.constant 0 : i32
    %c0_i32_0 = arith.constant 0 : i32
    %c0_i32_1 = arith.constant 0 : i32
    return %c0_i32, %c0_i32_0 : i32, i32
  }
  func.func @transform_8(%arg0: i32) -> (i32, i32) {
    %c0_i32 = arith.constant 0 : i32
    %c0_i32_0 = arith.constant 0 : i32
    %c0_i32_1 = arith.constant 0 : i32
    return %c0_i32, %c0_i32_0 : i32, i32
  }
  func.func @transform_9(%arg0: i32) -> (i32, i32) {
    %c0_i32 = arith.constant 0 : i32
    %c0_i32_0 = arith.constant 0 : i32
    %c0_i32_1 = arith.constant 0 : i32
    return %c0_i32, %c0_i32_0 : i32, i32
  }
  func.func @transform_10(%arg0: i32) -> (i32, i32) {
    %c0_i32 = arith.constant 0 : i32
    %c0_i32_0 = arith.constant 0 : i32
    %c0_i32_1 = arith.constant 0 : i32
    return %c0_i32, %c0_i32_0 : i32, i32
  }
  func.func @transform_11(%arg0: i32) -> (i32, i32) {
    %c0_i32 = arith.constant 0 : i32
    %c0_i32_0 = arith.constant 0 : i32
    %c0_i32_1 = arith.constant 0 : i32
    return %c0_i32, %c0_i32_0 : i32, i32
  }
  func.func @transform_12(%arg0: i32) -> (i32, i32, i32) {
    %c0_i32 = arith.constant 0 : i32
    %c0_i32_0 = arith.constant 0 : i32
    %c0_i32_1 = arith.constant 0 : i32
    return %arg0, %c0_i32, %c0_i32_0 : i32, i32, i32
  }
}

</mosaic_0001>

<llo_original>
// kernel: tpu_custom_call.1
$region0: #{tpu_custom_call.1}
  #allocation0 [shape = 'u32[]', space=smem, size = 0x4, offset = 0x4, fixed_abs, tag = 'smem constant byte address 0x4 - core index']
  #allocation1 [shape = 'u32[144,128]{1,0:T(1,128)}', space=vmem, size = 0x12000, scoped, tag = 'internal scratch']
  #allocation2 [shape = 'f32[8,32]{1,0:T(8,128)}', space=vmem, size = 0x1000, scoped, tag = 'scratch operand']
  %s0 = inlined_call_operand.vmem [shape: f32[2,8,32], index: 0, kind: input, shape index: {}]
  %s1 = inlined_call_operand.vmem [shape: f32[2,8,32], index: 1, kind: input, shape index: {}]
  %s2 = inlined_call_operand.hbm [shape: f32[2,8,32], index: 2, kind: input, shape index: {}]
  %s3 = inlined_call_operand.vmem [shape: f32[1,32], index: 3, kind: input, shape index: {}]
  %s4 = inlined_call_operand.vmem [shape: f32[1,32], index: 4, kind: input, shape index: {}]
  %s5 = inlined_call_operand.vmem [shape: bf16[3,32,32], index: 5, kind: input, shape index: {}]
  %s6 = inlined_call_operand.hbm [shape: f32[1,32], index: 6, kind: input, shape index: {}]
  %s7 = inlined_call_operand.hbm [shape: f32[1,32], index: 7, kind: input, shape index: {}]
  %s8 = inlined_call_operand.hbm [shape: bf16[32,128], index: 8, kind: input, shape index: {}]
  %s9 = inlined_call_operand.hbm [shape: f32[1,128], index: 9, kind: input, shape index: {}]
  %s10 = inlined_call_operand.vmem [shape: bf16[128,32], index: 10, kind: input, shape index: {}]
  %s11 = inlined_call_operand.vmem [shape: f32[1,32], index: 11, kind: input, shape index: {}]
  %s12 = inlined_call_operand.hbm [shape: f32[2,8,32], index: 12, kind: output, shape index: {}]
  %s13 = sld [smem:[#allocation0]]
  $region101: #{tpu_custom_call.1} parent=0
    _
  %s15 = ssub.s32 1, %s13
  %s16 = scalar_select 0, %s15, %s13
  $region1: #{tpu_custom_call.1} parent=0
    #allocation3 [shape = 'u8[8192]{0}', space=vmem, size = 0x2000, scoped, tag = 'input window, operand 2']
    #allocation4 [shape = 's32[2]{0}', space=sflag, size = 0x8, scoped, tag = 'scoped memory for tpu_custom_call.1']
    #allocation5 [shape = 's32[2]{0}', space=sflag, size = 0x8, scoped, tag = 'scoped memory for tpu_custom_call.1']
    #allocation6 [shape = 'u8[512]{0}', space=vmem, size = 0x400, scoped, tag = 'input window, operand 6, single buffered']
    #allocation7 [shape = 's32[1]{0}', space=sflag, size = 0x4, scoped, tag = 'scoped memory for tpu_custom_call.1']
    #allocation8 [shape = 'u8[512]{0}', space=vmem, size = 0x400, scoped, tag = 'input window, operand 7, single buffered']
    #allocation9 [shape = 'u8[8192]{0}', space=vmem, size = 0x2000, scoped, tag = 'input window, operand 8, single buffered']
    #allocation10 [shape = 's32[1]{0}', space=sflag, size = 0x4, scoped, tag = 'scoped memory for tpu_custom_call.1']
    #allocation11 [shape = 'u8[512]{0}', space=vmem, size = 0x400, scoped, tag = 'input window, operand 9, single buffered']
    #allocation12 [shape = 'u8[8192]{0}', space=vmem, size = 0x2000, scoped, tag = 'output window, operand 0']
    %17 = vsyncpa [#allocation4], 0
    %s18 = scalar_lea.sflag [#allocation4], 1
    %19 = vsyncpa %s18, 0
    %20 = vsyncpa [#allocation7], 0
    %21 = vsyncpa [#allocation10], 0
    %22 = vsyncpa [#allocation5], 0
    %s23 = scalar_lea.sflag [#allocation5], 1
    %24 = vsyncpa %s23, 0
    loop: start=0, step=1, limit=4
    $region2: #{tpu_custom_call.1} parent=1 // loop_pre_header
      _
    $region3: #{tpu_custom_call.1} parent=1 // loop_header
      %s26 = sphi 0, %s30
      %p27 = scmp.ge.s32.totalorder %s26, 4
      %s36 = sphi 0, %s38
      %s39 = sphi 0, %s36
      %s40 = sphi 0, %s39
      %s56 = sphi 0, %s40
      %s62 = sphi 0, %s64
      %s65 = sphi 0, %s62
      %s66 = sphi 0, %s65
      %s82 = sphi 0, %s66
      %s88 = sphi 0, %s90
      %s91 = sphi 0, %s88
      %s92 = sphi 0, %s91
      %s108 = sphi 0, %s92
      %s112 = sphi 0, %s112
      %s114 = sphi 0, %s112
      %s115 = sphi 0, %s114
      %s129 = sphi 0, %s115
      %s133 = sphi 0, %s133
      %s135 = sphi 0, %s133
      %s136 = sphi 0, %s135
      %s150 = sphi 0, %s136
      %s154 = sphi 0, %s154
      %s156 = sphi 0, %s154
      %s157 = sphi 0, %s156
      %s171 = sphi 0, %s157
      %s175 = sphi 0, %s175
      %s177 = sphi 0, %s175
      %s178 = sphi 0, %s177
      %s192 = sphi 0, %s178
      %s196 = sphi 0, %s196
      %s198 = sphi 0, %s196
      %s199 = sphi 0, %s198
      %s213 = sphi 0, %s199
      %s217 = sphi 0, %s217
      %s219 = sphi 0, %s217
      %s220 = sphi 0, %s219
      %s234 = sphi 0, %s220
      %s238 = sphi 0, %s238
      %s240 = sphi 0, %s238
      %s241 = sphi 0, %s240
      %s255 = sphi 0, %s241
      %s259 = sphi 0, %s259
      %s261 = sphi 0, %s259
      %s262 = sphi 0, %s261
      %s276 = sphi 0, %s262
      %s280 = sphi 0, %s280
      %s282 = sphi 0, %s280
      %s283 = sphi 0, %s282
      %s297 = sphi 0, %s283
      %s303 = sphi 0, %s305
      %s306 = sphi 0, %s303
      %s307 = sphi 0, %s306
      %s323 = sphi 0, %s307
    $region4: #{tpu_custom_call.1} parent=1 // loop_header_branch
      %29 = sbr.rel (%p27) target = $region8
    $region5: #{tpu_custom_call.1} parent=1 // loop_body
      %s31 = ssub.s32 %s26, 1
      %s32 = ssub.s32 %s26, 2
      %s33 = sadd.s32 %s26, 1
      %s34 = ssub.s32 %s26, %s33
      %p35 = scmp.eq.s32.totalorder %s34, 0
      %s37 = sadd.s32 %s36, 1
      %s38 = scalar_select %p35, %s36, %s37
      %p41 = pneg %p35
      %p42 = scmp.eq.s32.totalorder %s26, 1
      %p43 = por %p41, %p42
      %p44 = scmp.ne.s32.totalorder %s36, %s39
      %p45 = scmp.eq.s32.totalorder %s26, 0
      %p46 = por %p44, %p45
      %p47 = scmp.ne.s32.totalorder %s36, %s39
      %p48 = scmp.eq.s32.totalorder %s31, 1
      %p49 = por %p47, %p48
      %p50 = scmp.ne.s32.totalorder %s39, %s40
      %p51 = scmp.eq.s32.totalorder %s31, 0
      %p52 = por %p50, %p51
      %p53 = scmp.ne.s32.totalorder %s39, %s40
      %p54 = scmp.eq.s32.totalorder %s32, 1
      %p55 = por %p53, %p54
      %p57 = scmp.ne.s32.totalorder %s40, %s56
      %p58 = scmp.eq.s32.totalorder %s32, 0
      %p59 = por %p57, %p58
      %s60 = ssub.s32 %s26, %s33
      %p61 = scmp.eq.s32.totalorder %s60, 0
      %s63 = sadd.s32 %s62, 1
      %s64 = scalar_select %p61, %s62, %s63
      %p67 = pneg %p61
      %p68 = scmp.eq.s32.totalorder %s26, 1
      %p69 = por %p67, %p68
      %p70 = scmp.ne.s32.totalorder %s62, %s65
      %p71 = scmp.eq.s32.totalorder %s26, 0
      %p72 = por %p70, %p71
      %p73 = scmp.ne.s32.totalorder %s62, %s65
      %p74 = scmp.eq.s32.totalorder %s31, 1
      %p75 = por %p73, %p74
      %p76 = scmp.ne.s32.totalorder %s65, %s66
      %p77 = scmp.eq.s32.totalorder %s31, 0
      %p78 = por %p76, %p77
      %p79 = scmp.ne.s32.totalorder %s65, %s66
      %p80 = scmp.eq.s32.totalorder %s32, 1
      %p81 = por %p79, %p80
      %p83 = scmp.ne.s32.totalorder %s66, %s82
      %p84 = scmp.eq.s32.totalorder %s32, 0
      %p85 = por %p83, %p84
      %s86 = ssub.s32 %s26, %s33
      %p87 = scmp.eq.s32.totalorder %s86, 0
      %s89 = sadd.s32 %s88, 1
      %s90 = scalar_select %p87, %s88, %s89
      %p93 = pneg %p87
      %p94 = scmp.eq.s32.totalorder %s26, 1
      %p95 = por %p93, %p94
      %p96 = scmp.ne.s32.totalorder %s88, %s91
      %p97 = scmp.eq.s32.totalorder %s26, 0
      %p98 = por %p96, %p97
      %p99 = scmp.ne.s32.totalorder %s88, %s91
      %p100 = scmp.eq.s32.totalorder %s31, 1
      %p101 = por %p99, %p100
      %p102 = scmp.ne.s32.totalorder %s91, %s92
      %p103 = scmp.eq.s32.totalorder %s31, 0
      %p104 = por %p102, %p103
      %p105 = scmp.ne.s32.totalorder %s91, %s92
      %p106 = scmp.eq.s32.totalorder %s32, 1
      %p107 = por %p105, %p106
      %p109 = scmp.ne.s32.totalorder %s92, %s108
      %p110 = scmp.eq.s32.totalorder %s32, 0
      %p111 = por %p109, %p110
      %s113 = sadd.s32 %s112, 1
      %p116 = scmp.eq.s32.totalorder %s26, 1
      %p117 = scmp.ne.s32.totalorder %s112, %s114
      %p118 = scmp.eq.s32.totalorder %s26, 0
      %p119 = por %p117, %p118
      %p120 = scmp.ne.s32.totalorder %s112, %s114
      %p121 = scmp.eq.s32.totalorder %s31, 1
      %p122 = por %p120, %p121
      %p123 = scmp.ne.s32.totalorder %s114, %s115
      %p124 = scmp.eq.s32.totalorder %s31, 0
      %p125 = por %p123, %p124
      %p126 = scmp.ne.s32.totalorder %s114, %s115
      %p127 = scmp.eq.s32.totalorder %s32, 1
      %p128 = por %p126, %p127
      %p130 = scmp.ne.s32.totalorder %s115, %s129
      %p131 = scmp.eq.s32.totalorder %s32, 0
      %p132 = por %p130, %p131
      %s134 = sadd.s32 %s133, 1
      %p137 = scmp.eq.s32.totalorder %s26, 1
      %p138 = scmp.ne.s32.totalorder %s133, %s135
      %p139 = scmp.eq.s32.totalorder %s26, 0
      %p140 = por %p138, %p139
      %p141 = scmp.ne.s32.totalorder %s133, %s135
      %p142 = scmp.eq.s32.totalorder %s31, 1
      %p143 = por %p141, %p142
      %p144 = scmp.ne.s32.totalorder %s135, %s136
      %p145 = scmp.eq.s32.totalorder %s31, 0
      %p146 = por %p144, %p145
      %p147 = scmp.ne.s32.totalorder %s135, %s136
      %p148 = scmp.eq.s32.totalorder %s32, 1
      %p149 = por %p147, %p148
      %p151 = scmp.ne.s32.totalorder %s136, %s150
      %p152 = scmp.eq.s32.totalorder %s32, 0
      %p153 = por %p151, %p152
      %s155 = sadd.s32 %s154, 1
      %p158 = scmp.eq.s32.totalorder %s26, 1
      %p159 = scmp.ne.s32.totalorder %s154, %s156
      %p160 = scmp.eq.s32.totalorder %s26, 0
      %p161 = por %p159, %p160
      %p162 = scmp.ne.s32.totalorder %s154, %s156
      %p163 = scmp.eq.s32.totalorder %s31, 1
      %p164 = por %p162, %p163
      %p165 = scmp.ne.s32.totalorder %s156, %s157
      %p166 = scmp.eq.s32.totalorder %s31, 0
      %p167 = por %p165, %p166
      %p168 = scmp.ne.s32.totalorder %s156, %s157
      %p169 = scmp.eq.s32.totalorder %s32, 1
      %p170 = por %p168, %p169
      %p172 = scmp.ne.s32.totalorder %s157, %s171
      %p173 = scmp.eq.s32.totalorder %s32, 0
      %p174 = por %p172, %p173
      %s176 = sadd.s32 %s175, 1
      %p179 = scmp.eq.s32.totalorder %s26, 1
      %p180 = scmp.ne.s32.totalorder %s175, %s177
      %p181 = scmp.eq.s32.totalorder %s26, 0
      %p182 = por %p180, %p181
      %p183 = scmp.ne.s32.totalorder %s175, %s177
      %p184 = scmp.eq.s32.totalorder %s31, 1
      %p185 = por %p183, %p184
      %p186 = scmp.ne.s32.totalorder %s177, %s178
      %p187 = scmp.eq.s32.totalorder %s31, 0
      %p188 = por %p186, %p187
      %p189 = scmp.ne.s32.totalorder %s177, %s178
      %p190 = scmp.eq.s32.totalorder %s32, 1
      %p191 = por %p189, %p190
      %p193 = scmp.ne.s32.totalorder %s178, %s192
      %p194 = scmp.eq.s32.totalorder %s32, 0
      %p195 = por %p193, %p194
      %s197 = sadd.s32 %s196, 1
      %p200 = scmp.eq.s32.totalorder %s26, 1
      %p201 = scmp.ne.s32.totalorder %s196, %s198
      %p202 = scmp.eq.s32.totalorder %s26, 0
      %p203 = por %p201, %p202
      %p204 = scmp.ne.s32.totalorder %s196, %s198
      %p205 = scmp.eq.s32.totalorder %s31, 1
      %p206 = por %p204, %p205
      %p207 = scmp.ne.s32.totalorder %s198, %s199
      %p208 = scmp.eq.s32.totalorder %s31, 0
      %p209 = por %p207, %p208
      %p210 = scmp.ne.s32.totalorder %s198, %s199
      %p211 = scmp.eq.s32.totalorder %s32, 1
      %p212 = por %p210, %p211
      %p214 = scmp.ne.s32.totalorder %s199, %s213
      %p215 = scmp.eq.s32.totalorder %s32, 0
      %p216 = por %p214, %p215
      %s218 = sadd.s32 %s217, 1
      %p221 = scmp.eq.s32.totalorder %s26, 1
      %p222 = scmp.ne.s32.totalorder %s217, %s219
      %p223 = scmp.eq.s32.totalorder %s26, 0
      %p224 = por %p222, %p223
      %p225 = scmp.ne.s32.totalorder %s217, %s219
      %p226 = scmp.eq.s32.totalorder %s31, 1
      %p227 = por %p225, %p226
      %p228 = scmp.ne.s32.totalorder %s219, %s220
      %p229 = scmp.eq.s32.totalorder %s31, 0
      %p230 = por %p228, %p229
      %p231 = scmp.ne.s32.totalorder %s219, %s220
      %p232 = scmp.eq.s32.totalorder %s32, 1
      %p233 = por %p231, %p232
      %p235 = scmp.ne.s32.totalorder %s220, %s234
      %p236 = scmp.eq.s32.totalorder %s32, 0
      %p237 = por %p235, %p236
      %s239 = sadd.s32 %s238, 1
      %p242 = scmp.eq.s32.totalorder %s26, 1
      %p243 = scmp.ne.s32.totalorder %s238, %s240
      %p244 = scmp.eq.s32.totalorder %s26, 0
      %p245 = por %p243, %p244
      %p246 = scmp.ne.s32.totalorder %s238, %s240
      %p247 = scmp.eq.s32.totalorder %s31, 1
      %p248 = por %p246, %p247
      %p249 = scmp.ne.s32.totalorder %s240, %s241
      %p250 = scmp.eq.s32.totalorder %s31, 0
      %p251 = por %p249, %p250
      %p252 = scmp.ne.s32.totalorder %s240, %s241
      %p253 = scmp.eq.s32.totalorder %s32, 1
      %p254 = por %p252, %p253
      %p256 = scmp.ne.s32.totalorder %s241, %s255
      %p257 = scmp.eq.s32.totalorder %s32, 0
      %p258 = por %p256, %p257
      %s260 = sadd.s32 %s259, 1
      %p263 = scmp.eq.s32.totalorder %s26, 1
      %p264 = scmp.ne.s32.totalorder %s259, %s261
      %p265 = scmp.eq.s32.totalorder %s26, 0
      %p266 = por %p264, %p265
      %p267 = scmp.ne.s32.totalorder %s259, %s261
      %p268 = scmp.eq.s32.totalorder %s31, 1
      %p269 = por %p267, %p268
      %p270 = scmp.ne.s32.totalorder %s261, %s262
      %p271 = scmp.eq.s32.totalorder %s31, 0
      %p272 = por %p270, %p271
      %p273 = scmp.ne.s32.totalorder %s261, %s262
      %p274 = scmp.eq.s32.totalorder %s32, 1
      %p275 = por %p273, %p274
      %p277 = scmp.ne.s32.totalorder %s262, %s276
      %p278 = scmp.eq.s32.totalorder %s32, 0
      %p279 = por %p277, %p278
      %s281 = sadd.s32 %s280, 1
      %p284 = scmp.eq.s32.totalorder %s26, 1
      %p285 = scmp.ne.s32.totalorder %s280, %s282
      %p286 = scmp.eq.s32.totalorder %s26, 0
      %p287 = por %p285, %p286
      %p288 = scmp.ne.s32.totalorder %s280, %s282
      %p289 = scmp.eq.s32.totalorder %s31, 1
      %p290 = por %p288, %p289
      %p291 = scmp.ne.s32.totalorder %s282, %s283
      %p292 = scmp.eq.s32.totalorder %s31, 0
      %p293 = por %p291, %p292
      %p294 = scmp.ne.s32.totalorder %s282, %s283
      %p295 = scmp.eq.s32.totalorder %s32, 1
      %p296 = por %p294, %p295
      %p298 = scmp.ne.s32.totalorder %s283, %s297
      %p299 = scmp.eq.s32.totalorder %s32, 0
      %p300 = por %p298, %p299
      %s301 = ssub.s32 %s26, %s33
      %p302 = scmp.eq.s32.totalorder %s301, 0
      %s304 = sadd.s32 %s303, 1
      %s305 = scalar_select %p302, %s303, %s304
      %p308 = pneg %p302
      %p309 = scmp.eq.s32.totalorder %s26, 1
      %p310 = por %p308, %p309
      %p311 = scmp.ne.s32.totalorder %s303, %s306
      %p312 = scmp.eq.s32.totalorder %s26, 0
      %p313 = por %p311, %p312
      %p314 = scmp.ne.s32.totalorder %s303, %s306
      %p315 = scmp.eq.s32.totalorder %s31, 1
      %p316 = por %p314, %p315
      %p317 = scmp.ne.s32.totalorder %s306, %s307
      %p318 = scmp.eq.s32.totalorder %s31, 0
      %p319 = por %p317, %p318
      %p320 = scmp.ne.s32.totalorder %s306, %s307
      %p321 = scmp.eq.s32.totalorder %s32, 1
      %p322 = por %p320, %p321
      %p324 = scmp.ne.s32.totalorder %s307, %s323
      %p325 = scmp.eq.s32.totalorder %s32, 0
      %p326 = por %p324, %p325
      %p327 = scmp.le.s32.totalorder 1, %s26
      %p328 = scmp.lt.s32.totalorder %s26, 3
      %p329 = pnand %p327, %p328
      %p330 = pneg %p329
      // Predicated region
      $region9: #{tpu_custom_call.1} parent=5 // pred_check
        _
      $region10: #{tpu_custom_call.1} parent=5 // pred_check_branch
        %332 = sbr.rel (%p329) target = $region12
      $region11: #{tpu_custom_call.1} parent=5 // pred_region
        %s333 = ssub.s32 %s26, 1
        // Predicated region
        $region13: #{tpu_custom_call.1} parent=11 // pred_check
          %p334 = pneg %p125
        $region14: #{tpu_custom_call.1} parent=11 // pred_check_branch
          %336 = sbr.rel (%p334) target = $region16
        $region15: #{tpu_custom_call.1} parent=11 // pred_region
          _
        $region16: #{tpu_custom_call.1} parent=11 // pred_fallthru
          _
        // Predicated region
        $region17: #{tpu_custom_call.1} parent=11 // pred_check
          %p337 = pneg %p146
        $region18: #{tpu_custom_call.1} parent=11 // pred_check_branch
          %339 = sbr.rel (%p337) target = $region20
        $region19: #{tpu_custom_call.1} parent=11 // pred_region
          _
        $region20: #{tpu_custom_call.1} parent=11 // pred_fallthru
          _
        // Predicated region
        $region21: #{tpu_custom_call.1} parent=11 // pred_check
          %p340 = pneg %p167
        $region22: #{tpu_custom_call.1} parent=11 // pred_check_branch
          %342 = sbr.rel (%p340) target = $region24
        $region23: #{tpu_custom_call.1} parent=11 // pred_region
          _
        $region24: #{tpu_custom_call.1} parent=11 // pred_fallthru
          _
        // Predicated region
        $region25: #{tpu_custom_call.1} parent=11 // pred_check
          %p343 = pneg %p188
        $region26: #{tpu_custom_call.1} parent=11 // pred_check_branch
          %345 = sbr.rel (%p343) target = $region28
        $region27: #{tpu_custom_call.1} parent=11 // pred_region
          %s347 = ssub.s32 16, 16
          %348 = vsyncadd [#allocation7], %s347
          %s350 = sshll.u32 [#allocation6], 4
          %s351 = int_to_ptr.vmem [resolvable:$true] %s350
          %353 = dma.hbm_to_vmem [thread:$0]  %s6, 16, %s351, [#allocation7]
        $region28: #{tpu_custom_call.1} parent=11 // pred_fallthru
          _
        // Predicated region
        $region29: #{tpu_custom_call.1} parent=11 // pred_check
          %p354 = pneg %p209
        $region30: #{tpu_custom_call.1} parent=11 // pred_check_branch
          %356 = sbr.rel (%p354) target = $region32
        $region31: #{tpu_custom_call.1} parent=11 // pred_region
          %s358 = ssub.s32 16, 16
          %359 = vsyncadd [#allocation7], %s358
          %s361 = sshll.u32 [#allocation8], 4
          %s362 = int_to_ptr.vmem [resolvable:$true] %s361
          %364 = dma.hbm_to_vmem [thread:$0]  %s7, 16, %s362, [#allocation7]
        $region32: #{tpu_custom_call.1} parent=11 // pred_fallthru
          _
        // Predicated region
        $region33: #{tpu_custom_call.1} parent=11 // pred_check
          %p365 = pneg %p230
        $region34: #{tpu_custom_call.1} parent=11 // pred_check_branch
          %367 = sbr.rel (%p365) target = $region36
        $region35: #{tpu_custom_call.1} parent=11 // pred_region
          %s369 = ssub.s32 256, 256
          %370 = vsyncadd [#allocation10], %s369
          %s371 = sshll.u32 [#allocation9], 4
          %s372 = int_to_ptr.vmem [resolvable:$true] %s371
          %377 = dma.hbm_to_vmem [thread:$0]  %s8, 256, %s372, [#allocation10], 64, 64, 4
        $region36: #{tpu_custom_call.1} parent=11 // pred_fallthru
          _
        // Predicated region
        $region37: #{tpu_custom_call.1} parent=11 // pred_check
          %p378 = pneg %p251
        $region38: #{tpu_custom_call.1} parent=11 // pred_check_branch
          %380 = sbr.rel (%p378) target = $region40
        $region39: #{tpu_custom_call.1} parent=11 // pred_region
          %s382 = ssub.s32 16, 16
          %383 = vsyncadd [#allocation10], %s382
          %s385 = sshll.u32 [#allocation11], 4
          %s386 = int_to_ptr.vmem [resolvable:$true] %s385
          %388 = dma.hbm_to_vmem [thread:$0]  %s9, 16, %s386, [#allocation10]
        $region40: #{tpu_custom_call.1} parent=11 // pred_fallthru
          _
        // Predicated region
        $region41: #{tpu_custom_call.1} parent=11 // pred_check
          %p389 = pneg %p272
        $region42: #{tpu_custom_call.1} parent=11 // pred_check_branch
          %391 = sbr.rel (%p389) target = $region44
        $region43: #{tpu_custom_call.1} parent=11 // pred_region
          _
        $region44: #{tpu_custom_call.1} parent=11 // pred_fallthru
          _
        // Predicated region
        $region45: #{tpu_custom_call.1} parent=11 // pred_check
          %p392 = pneg %p293
        $region46: #{tpu_custom_call.1} parent=11 // pred_check_branch
          %394 = sbr.rel (%p392) target = $region48
        $region47: #{tpu_custom_call.1} parent=11 // pred_region
          _
        $region48: #{tpu_custom_call.1} parent=11 // pred_fallthru
          _
      $region12: #{tpu_custom_call.1} parent=5 // pred_fallthru
        _
      %p395 = scmp.lt.s32.totalorder %s26, 2
      // Predicated region
      $region49: #{tpu_custom_call.1} parent=5 // pred_check
        %p396 = pneg %p395
      $region50: #{tpu_custom_call.1} parent=5 // pred_check_branch
        %398 = sbr.rel (%p396) target = $region52
      $region51: #{tpu_custom_call.1} parent=5 // pred_region
        // Predicated region
        $region53: #{tpu_custom_call.1} parent=51 // pred_check
          %p399 = pneg %p46
        $region54: #{tpu_custom_call.1} parent=51 // pred_check_branch
          %401 = sbr.rel (%p399) target = $region56
        $region55: #{tpu_custom_call.1} parent=51 // pred_region
          %p402 = scmp.lt.s32.totalorder %s26, 1
          %s403 = scalar_select %p402, %s26, 1
          %s404 = smul.addr %s403, 8
          %s405 = scalar_lea.vmem %s0, %s404
        $region56: #{tpu_custom_call.1} parent=51 // pred_fallthru
          _
        // Predicated region
        $region57: #{tpu_custom_call.1} parent=51 // pred_check
          %p406 = pneg %p72
        $region58: #{tpu_custom_call.1} parent=51 // pred_check_branch
          %408 = sbr.rel (%p406) target = $region60
        $region59: #{tpu_custom_call.1} parent=51 // pred_region
          %p409 = scmp.lt.s32.totalorder %s26, 1
          %s410 = scalar_select %p409, %s26, 1
          %s411 = smul.addr %s410, 8
          %s412 = scalar_lea.vmem %s1, %s411
        $region60: #{tpu_custom_call.1} parent=51 // pred_fallthru
          _
        // Predicated region
        $region61: #{tpu_custom_call.1} parent=51 // pred_check
          %p413 = pneg %p98
        $region62: #{tpu_custom_call.1} parent=51 // pred_check_branch
          %415 = sbr.rel (%p413) target = $region64
        $region63: #{tpu_custom_call.1} parent=51 // pred_region
          %s416 = sand.u32 %s88, 1
          %s417 = scalar_lea.sflag [#allocation4], %s416
          %s418 = sand.u32 %s88, 1
          %s419 = smul.addr %s418, 8
          %s420 = scalar_lea.vmem [#allocation3], %s419
          %s422 = ssub.s32 128, 128
          %423 = vsyncadd %s417, %s422
          %s424 = smul.addr %s26, 128
          %s425 = scalar_lea.hbm %s2, %s424
          %s427 = sshll.u32 %s420, 4
          %s428 = int_to_ptr.vmem [resolvable:$true] %s427
          %430 = dma.hbm_to_vmem [thread:$0]  %s425, 128, %s428, %s417
        $region64: #{tpu_custom_call.1} parent=51 // pred_fallthru
          _
      $region52: #{tpu_custom_call.1} parent=5 // pred_fallthru
        _
      %p431 = scmp.le.s32.totalorder 1, %s26
      %p432 = scmp.lt.s32.totalorder %s26, 3
      %p433 = pnand %p431, %p432
      %p434 = pneg %p433
      // Predicated region
      $region65: #{tpu_custom_call.1} parent=5 // pred_check
        _
      $region66: #{tpu_custom_call.1} parent=5 // pred_check_branch
        %436 = sbr.rel (%p433) target = $region68
      $region67: #{tpu_custom_call.1} parent=5 // pred_region
        %s437 = ssub.s32 %s26, 1
        %s438 = sand.u32 %s91, 1
        %s439 = scalar_lea.sflag [#allocation4], %s438
        %s440 = sand.u32 %s91, 1
        %s441 = smul.addr %s440, 8
        %s442 = scalar_lea.vmem [#allocation3], %s441
        // Predicated region
        $region69: #{tpu_custom_call.1} parent=67 // pred_check
          %p443 = pneg %p104
        $region70: #{tpu_custom_call.1} parent=67 // pred_check_branch
          %445 = sbr.rel (%p443) target = $region72
        $region71: #{tpu_custom_call.1} parent=67 // pred_region
          %446 = dma.done %s439, 128
        $region72: #{tpu_custom_call.1} parent=67 // pred_fallthru
          _
        // Predicated region
        $region73: #{tpu_custom_call.1} parent=67 // pred_check
          %p447 = pneg %p188
        $region74: #{tpu_custom_call.1} parent=67 // pred_check_branch
          %449 = sbr.rel (%p447) target = $region76
        $region75: #{tpu_custom_call.1} parent=67 // pred_region
          %450 = dma.done [#allocation7], 16
        $region76: #{tpu_custom_call.1} parent=67 // pred_fallthru
          _
        // Predicated region
        $region77: #{tpu_custom_call.1} parent=67 // pred_check
          %p451 = pneg %p209
        $region78: #{tpu_custom_call.1} parent=67 // pred_check_branch
          %453 = sbr.rel (%p451) target = $region80
        $region79: #{tpu_custom_call.1} parent=67 // pred_region
          %454 = dma.done [#allocation7], 16
        $region80: #{tpu_custom_call.1} parent=67 // pred_fallthru
          _
        // Predicated region
        $region81: #{tpu_custom_call.1} parent=67 // pred_check
          %p455 = pneg %p230
        $region82: #{tpu_custom_call.1} parent=67 // pred_check_branch
          %457 = sbr.rel (%p455) target = $region84
        $region83: #{tpu_custom_call.1} parent=67 // pred_region
          %458 = dma.done [#allocation10], 256
        $region84: #{tpu_custom_call.1} parent=67 // pred_fallthru
          _
        // Predicated region
        $region85: #{tpu_custom_call.1} parent=67 // pred_check
          %p459 = pneg %p251
        $region86: #{tpu_custom_call.1} parent=67 // pred_check_branch
          %461 = sbr.rel (%p459) target = $region88
        $region87: #{tpu_custom_call.1} parent=67 // pred_region
          %462 = dma.done [#allocation10], 16
        $region88: #{tpu_custom_call.1} parent=67 // pred_fallthru
          _
        %p463 = scmp.lt.s32.totalorder %s31, 1
        %s464 = scalar_select %p463, %s31, 1
        %s465 = smul.addr %s464, 8
        %s466 = scalar_lea.vmem %s0, %s465
        %p467 = pneg %p52
        %p468 = pneg %p49
        %p469 = scmp.lt.s32.totalorder %s31, 1
        %s470 = scalar_select %p469, %s31, 1
        %s471 = smul.addr %s470, 8
        %s472 = scalar_lea.vmem %s1, %s471
        %p473 = pneg %p78
        %p474 = pneg %p75
        %s475 = sand.u32 %s91, 1
        %s476 = scalar_lea.sflag [#allocation4], %s475
        %s477 = sand.u32 %s91, 1
        %s478 = smul.addr %s477, 8
        %s479 = scalar_lea.vmem [#allocation3], %s478
        %p480 = pneg %p104
        %p481 = pneg %p101
        %p482 = pneg %p125
        %p483 = pneg %p122
        %p484 = pneg %p146
        %p485 = pneg %p143
        %p486 = pneg %p167
        %p487 = pneg %p164
        %p488 = pneg %p188
        %p489 = pneg %p185
        %p490 = pneg %p209
        %p491 = pneg %p206
        %p492 = pneg %p230
        %p493 = pneg %p227
        %p494 = pneg %p251
        %p495 = pneg %p248
        %p496 = pneg %p272
        %p497 = pneg %p269
        %p498 = pneg %p293
        %p499 = pneg %p290
        %p500 = pneg %p319
        %p501 = pneg %p316
        %s502 = sand.u32 %s306, 1
        %s503 = scalar_lea.sflag [#allocation5], %s502
        %s504 = sand.u32 %s306, 1
        %s505 = smul.addr %s504, 8
        %s506 = scalar_lea.vmem [#allocation12], %s505
        %p507 = scmp.lt.s32.totalorder %s31, 1
        %s508 = scalar_select %p507, %s31, 1
        %s509 = smul.addr %s508, 8
        %s510 = scalar_lea.vmem %s0, %s509
        %p511 = scmp.lt.s32.totalorder %s31, 1
        %s512 = scalar_select %p511, %s31, 1
        %s513 = smul.addr %s512, 8
        %s514 = scalar_lea.vmem %s1, %s513
        %v516 = vld [vmem:[%s510] sm:$0xff]
        %v517 = vld [vmem:[%s514] sm:$0xff]
        %v518 = vld [vmem:[%s442] sm:$0xff]
        %v519 = vld [vmem:[%s3] sm:$0x1]
        %v520 = vld [vmem:[%s4] sm:$0x1]
        %vm521 = vcmask 261120
        %v522 = vsel %vm521, %v516, 0.0
        %523 = vadd.xlane.f32.xlu0 %v522
        %v524 = vpop.xlane.xlu0 %523
        %v525 = vsel %vm521, %v517, 0.0
        %526 = vadd.xlane.f32.xlu0 %v525
        %v527 = vpop.xlane.xlu0 %526
        %v528 = vsel %vm521, %v518, 0.0
        %529 = vadd.xlane.f32.xlu0 %v528
        %v530 = vpop.xlane.xlu0 %529
        %v531 = vrcp.pop 32.0
        %v532 = vmul.f32 %v524, %v531
        %v533 = vmul.f32 %v527, %v531
        %v534 = vmul.f32 %v530, %v531
        %v535 = vsub.f32 %v516, %v532
        %v536 = vsub.f32 %v517, %v533
        %v537 = vsub.f32 %v518, %v534
        %v538 = vmul.f32 %v535, %v535
        %v539 = vmul.f32 %v536, %v536
        %v540 = vmul.f32 %v537, %v537
        %v541 = vsel %vm521, %v538, 0.0
        %542 = vadd.xlane.f32.xlu0 %v541
        %v543 = vpop.xlane.xlu0 %542
        %v544 = vsel %vm521, %v539, 0.0
        %545 = vadd.xlane.f32.xlu0 %v544
        %v546 = vpop.xlane.xlu0 %545
        %v547 = vsel %vm521, %v540, 0.0
        %548 = vadd.xlane.f32.xlu0 %v547
        %v549 = vpop.xlane.xlu0 %548
        %v550 = vmul.f32 %v543, %v531
        %v551 = vmul.f32 %v546, %v531
        %v552 = vmul.f32 %v549, %v531
        %v553 = vadd.f32 %v550, 1e-05
        %v554 = vadd.f32 %v551, 1e-05
        %v555 = vadd.f32 %v552, 1e-05
        %v556 = vrsqrt.pop %v553
        %v557 = vrsqrt.pop %v554
        %v558 = vrsqrt.pop %v555
        %v559 = vmul.f32 %v535, %v556
        %v560 = vmul.f32 %v536, %v557
        %v561 = vmul.f32 %v537, %v558
        %v563 = vlaneseq
        %v564 = vshrl.u32 %v563, 7
        %v565 = vsub.s32 0, %v564
        %v566 = vrot.slane %v519, %v565
        %v568 = vmul.f32 %v559, %v566
        %v569 = vmul.f32 %v560, %v566
        %v570 = vmul.f32 %v561, %v566
        %v572 = vlaneseq
        %v573 = vshrl.u32 %v572, 7
        %v574 = vsub.s32 0, %v573
        %v575 = vrot.slane %v520, %v574
        %v577 = vadd.f32 %v568, %v575
        %v578 = vadd.f32 %v569, %v575
        %v579 = vadd.f32 %v570, %v575
        %v580 = vpack.c.bf16 %v577, %v577
        %v581 = vpack.c.bf16 %v578, %v578
        %v582 = vpack.c.bf16 %v579, %v579
        %v583 = vld [vmem:[%s5] sm:$0xf]
        %v584 = vld [vmem:[%s5 + $0x4] sm:$0xf]
        %v585 = vld [vmem:[%s5 + $0x8] sm:$0xf]
        %v586 = vld [vmem:[%s5 + $0xc] sm:$0xf]
        %v587 = vld [vmem:[%s5 + $0x10] sm:$0xf]
        %v588 = vld [vmem:[%s5 + $0x14] sm:$0xf]
        %v589 = vld [vmem:[%s5 + $0x18] sm:$0xf]
        %v590 = vld [vmem:[%s5 + $0x1c] sm:$0xf]
        %v591 = vld [vmem:[%s5 + $0x20] sm:$0xf]
        %v592 = vld [vmem:[%s5 + $0x24] sm:$0xf]
        %v593 = vld [vmem:[%s5 + $0x28] sm:$0xf]
        %v594 = vld [vmem:[%s5 + $0x2c] sm:$0xf]
        %v599 = vunpack.c.l.b16 %v583
        %v600 = vunpack.c.l.b16 %v584
        %v601 = vunpack.c.l.b16 %v585
        %v602 = vunpack.c.l.b16 %v586
        %v603 = vpack.c.b16 %v600, %v599
        %v604 = vpack.c.b16 %v602, %v601
        %v608 = vsel %vm521, %v580, 0
        %610 = vmatprep.subr.bf16.mxu0 0
        %611 = vmatpush1.bf16.msra.mxu0 0
        %612 = vmatprep.subr.bf16.mxu0 0
        %613 = vmatpush1.bf16.msra.mxu0 0
        %614 = vmatprep.subr.bf16.mxu0 0
        %615 = vmatpush1.bf16.msra.mxu0 0
        %616 = vmatprep.subr.bf16.mxu0 0
        %617 = vmatpush1.bf16.msra.mxu0 0
        %618 = vmatprep.subr.bf16.mxu0 0
        %619 = vmatpush1.bf16.msra.mxu0 0
        %620 = vmatprep.subr.bf16.mxu0 0
        %621 = vmatpush1.bf16.msra.mxu0 0
        %622 = vmatprep.subr.bf16.mxu0 0
        %623 = vmatpush1.bf16.msra.mxu0 %v604
        %624 = vmatprep.subr.bf16.mxu0 0
        %625 = vmatpush1.bf16.msra.mxu0 %v603
        %626 = vmatprep.subr.bf16.mxu0 0
        %627 = vmatpush2.bf16.msra.mxu0 0
        %628 = vmatprep.subr.bf16.mxu0 0
        %629 = vmatpush2.bf16.msra.mxu0 0
        %630 = vmatprep.subr.bf16.mxu0 0
        %631 = vmatpush2.bf16.msra.mxu0 0
        %632 = vmatprep.subr.bf16.mxu0 0
        %633 = vmatpush2.bf16.msra.mxu0 0
        %634 = vmatprep.subr.bf16.mxu0 0
        %635 = vmatpush2.bf16.msra.mxu0 0
        %636 = vmatprep.subr.bf16.mxu0 0
        %637 = vmatpush2.bf16.msra.mxu0 0
        %638 = vmatprep.subr.bf16.mxu0 0
        %639 = vmatpush2.bf16.msra.mxu0 0
        %640 = vmatprep.subr.bf16.mxu0 0
        %641 = vmatpush2.bf16.msra.mxu0 0
        %642 = vmatprep.mubr.bf16.mxu0 0
        %643 = vmatmul.mubr.bf16.gmra.mxu0 %v608
        %v644 = vpop.f32.mrf.mxu0
        %v645 = vadd.f32 0.0, %v644
        %v646 = vpop.f32.mrf.mxu0
        %v647 = vpop.f32.mrf.mxu0
        %v648 = vpop.f32.mrf.mxu0
        %649 = vdwg.mxu0
        %v654 = vunpack.c.l.b16 %v587
        %v655 = vunpack.c.l.b16 %v588
        %v656 = vunpack.c.l.b16 %v589
        %v657 = vunpack.c.l.b16 %v590
        %v658 = vpack.c.b16 %v655, %v654
        %v659 = vpack.c.b16 %v657, %v656
        %v663 = vsel %vm521, %v581, 0
        %665 = vmatprep.subr.bf16.mxu0 0
        %666 = vmatpush1.bf16.msra.mxu0 0
        %667 = vmatprep.subr.bf16.mxu0 0
        %668 = vmatpush1.bf16.msra.mxu0 0
        %669 = vmatprep.subr.bf16.mxu0 0
        %670 = vmatpush1.bf16.msra.mxu0 0
        %671 = vmatprep.subr.bf16.mxu0 0
        %672 = vmatpush1.bf16.msra.mxu0 0
        %673 = vmatprep.subr.bf16.mxu0 0
        %674 = vmatpush1.bf16.msra.mxu0 0
        %675 = vmatprep.subr.bf16.mxu0 0
        %676 = vmatpush1.bf16.msra.mxu0 0
        %677 = vmatprep.subr.bf16.mxu0 0
        %678 = vmatpush1.bf16.msra.mxu0 %v659
        %679 = vmatprep.subr.bf16.mxu0 0
        %680 = vmatpush1.bf16.msra.mxu0 %v658
        %681 = vmatprep.subr.bf16.mxu0 0
        %682 = vmatpush2.bf16.msra.mxu0 0
        %683 = vmatprep.subr.bf16.mxu0 0
        %684 = vmatpush2.bf16.msra.mxu0 0
        %685 = vmatprep.subr.bf16.mxu0 0
        %686 = vmatpush2.bf16.msra.mxu0 0
        %687 = vmatprep.subr.bf16.mxu0 0
        %688 = vmatpush2.bf16.msra.mxu0 0
        %689 = vmatprep.subr.bf16.mxu0 0
        %690 = vmatpush2.bf16.msra.mxu0 0
        %691 = vmatprep.subr.bf16.mxu0 0
        %692 = vmatpush2.bf16.msra.mxu0 0
        %693 = vmatprep.subr.bf16.mxu0 0
        %694 = vmatpush2.bf16.msra.mxu0 0
        %695 = vmatprep.subr.bf16.mxu0 0
        %696 = vmatpush2.bf16.msra.mxu0 0
        %697 = vmatprep.mubr.bf16.mxu0 0
        %698 = vmatmul.mubr.bf16.gmra.mxu0 %v663
        %v699 = vpop.f32.mrf.mxu0
        %v700 = vadd.f32 0.0, %v699
        %v701 = vpop.f32.mrf.mxu0
        %v702 = vpop.f32.mrf.mxu0
        %v703 = vpop.f32.mrf.mxu0
        %704 = vdwg.mxu0
        %v709 = vunpack.c.l.b16 %v591
        %v710 = vunpack.c.l.b16 %v592
        %v711 = vunpack.c.l.b16 %v593
        %v712 = vunpack.c.l.b16 %v594
        %v713 = vpack.c.b16 %v710, %v709
        %v714 = vpack.c.b16 %v712, %v711
        %v718 = vsel %vm521, %v582, 0
        %720 = vmatprep.subr.bf16.mxu0 0
        %721 = vmatpush1.bf16.msra.mxu0 0
        %722 = vmatprep.subr.bf16.mxu0 0
        %723 = vmatpush1.bf16.msra.mxu0 0
        %724 = vmatprep.subr.bf16.mxu0 0
        %725 = vmatpush1.bf16.msra.mxu0 0
        %726 = vmatprep.subr.bf16.mxu0 0
        %727 = vmatpush1.bf16.msra.mxu0 0
        %728 = vmatprep.subr.bf16.mxu0 0
        %729 = vmatpush1.bf16.msra.mxu0 0
        %730 = vmatprep.subr.bf16.mxu0 0
        %731 = vmatpush1.bf16.msra.mxu0 0
        %732 = vmatprep.subr.bf16.mxu0 0
        %733 = vmatpush1.bf16.msra.mxu0 %v714
        %734 = vmatprep.subr.bf16.mxu0 0
        %735 = vmatpush1.bf16.msra.mxu0 %v713
        %736 = vmatprep.subr.bf16.mxu0 0
        %737 = vmatpush2.bf16.msra.mxu0 0
        %738 = vmatprep.subr.bf16.mxu0 0
        %739 = vmatpush2.bf16.msra.mxu0 0
        %740 = vmatprep.subr.bf16.mxu0 0
        %741 = vmatpush2.bf16.msra.mxu0 0
        %742 = vmatprep.subr.bf16.mxu0 0
        %743 = vmatpush2.bf16.msra.mxu0 0
        %744 = vmatprep.subr.bf16.mxu0 0
        %745 = vmatpush2.bf16.msra.mxu0 0
        %746 = vmatprep.subr.bf16.mxu0 0
        %747 = vmatpush2.bf16.msra.mxu0 0
        %748 = vmatprep.subr.bf16.mxu0 0
        %749 = vmatpush2.bf16.msra.mxu0 0
        %750 = vmatprep.subr.bf16.mxu0 0
        %751 = vmatpush2.bf16.msra.mxu0 0
        %752 = vmatprep.mubr.bf16.mxu0 0
        %753 = vmatmul.mubr.bf16.gmra.mxu0 %v718
        %v754 = vpop.f32.mrf.mxu0
        %v755 = vadd.f32 0.0, %v754
        %v756 = vpop.f32.mrf.mxu0
        %v757 = vpop.f32.mrf.mxu0
        %v758 = vpop.f32.mrf.mxu0
        %759 = vdwg.mxu0
        %v760 = vpack.c.bf16 %v645, %v645
        %762 = vrot.lane.b32.xlu0 %v760, 120
        %v763 = vpop.permute.xlu0 %762
        %764 = vrot.lane.b32.xlu0 %v760, 112
        %v765 = vpop.permute.xlu0 %764
        %766 = vrot.lane.b32.xlu0 %v760, 104
        %v767 = vpop.permute.xlu0 %766
        %v768 = vpack.c.bf16 %v700, %v700
        %770 = vrot.lane.b32.xlu0 %v768, 120
        %v771 = vpop.permute.xlu0 %770
        %772 = vrot.lane.b32.xlu0 %v768, 112
        %v773 = vpop.permute.xlu0 %772
        %774 = vrot.lane.b32.xlu0 %v768, 104
        %v775 = vpop.permute.xlu0 %774
        %v776 = vpack.c.bf16 %v755, %v755
        %778 = vrot.lane.b32.xlu0 %v776, 120
        %v779 = vpop.permute.xlu0 %778
        %780 = vrot.lane.b32.xlu0 %v776, 112
        %v781 = vpop.permute.xlu0 %780
        %782 = vrot.lane.b32.xlu0 %v776, 104
        %v783 = vpop.permute.xlu0 %782
        %vm784 = vcmask 64512
        %v786 = vsel %vm784, %v760, 0
        %v789 = vsel %vm784, %v768, 0
        %791 = vmatprep.subr.bf16.mxu0 0
        %792 = vmatpush1.bf16.xpose.msra.mxu0 0
        %793 = vmatprep.subr.bf16.mxu0 0
        %794 = vmatpush1.bf16.xpose.msra.mxu0 0
        %795 = vmatprep.subr.bf16.mxu0 0
        %796 = vmatpush1.bf16.xpose.msra.mxu0 0
        %797 = vmatprep.subr.bf16.mxu0 0
        %798 = vmatpush1.bf16.xpose.msra.mxu0 0
        %799 = vmatprep.subr.bf16.mxu0 0
        %800 = vmatpush1.bf16.xpose.msra.mxu0 0
        %801 = vmatprep.subr.bf16.mxu0 0
        %802 = vmatpush1.bf16.xpose.msra.mxu0 0
        %803 = vmatprep.subr.bf16.mxu0 0
        %804 = vmatpush1.bf16.xpose.msra.mxu0 0
        %805 = vmatprep.subr.bf16.mxu0 0
        %806 = vmatpush1.bf16.xpose.msra.mxu0 %v789
        %807 = vmatprep.subr.bf16.mxu0 0
        %808 = vmatpush2.bf16.xpose.msra.mxu0 0
        %809 = vmatprep.subr.bf16.mxu0 0
        %810 = vmatpush2.bf16.xpose.msra.mxu0 0
        %811 = vmatprep.subr.bf16.mxu0 0
        %812 = vmatpush2.bf16.xpose.msra.mxu0 0
        %813 = vmatprep.subr.bf16.mxu0 0
        %814 = vmatpush2.bf16.xpose.msra.mxu0 0
        %815 = vmatprep.subr.bf16.mxu0 0
        %816 = vmatpush2.bf16.xpose.msra.mxu0 0
        %817 = vmatprep.subr.bf16.mxu0 0
        %818 = vmatpush2.bf16.xpose.msra.mxu0 0
        %819 = vmatprep.subr.bf16.mxu0 0
        %820 = vmatpush2.bf16.xpose.msra.mxu0 0
        %821 = vmatprep.subr.bf16.mxu0 0
        %822 = vmatpush2.bf16.xpose.msra.mxu0 0
        %823 = vmatprep.mubr.bf16.mxu0 0
        %824 = vmatmul.mubr.bf16.gmra.mxu0 %v786
        %v825 = vpop.f32.mrf.mxu0
        %v826 = vadd.f32 0.0, %v825
        %v827 = vpop.f32.mrf.mxu0
        %v828 = vpop.f32.mrf.mxu0
        %v829 = vpop.f32.mrf.mxu0
        %830 = vdwg.mxu0
        %v832 = vsel %vm784, %v763, 0
        %v835 = vsel %vm784, %v771, 0
        %837 = vmatprep.subr.bf16.mxu0 0
        %838 = vmatpush1.bf16.xpose.msra.mxu0 0
        %839 = vmatprep.subr.bf16.mxu0 0
        %840 = vmatpush1.bf16.xpose.msra.mxu0 0
        %841 = vmatprep.subr.bf16.mxu0 0
        %842 = vmatpush1.bf16.xpose.msra.mxu0 0
        %843 = vmatprep.subr.bf16.mxu0 0
        %844 = vmatpush1.bf16.xpose.msra.mxu0 0
        %845 = vmatprep.subr.bf16.mxu0 0
        %846 = vmatpush1.bf16.xpose.msra.mxu0 0
        %847 = vmatprep.subr.bf16.mxu0 0
        %848 = vmatpush1.bf16.xpose.msra.mxu0 0
        %849 = vmatprep.subr.bf16.mxu0 0
        %850 = vmatpush1.bf16.xpose.msra.mxu0 0
        %851 = vmatprep.subr.bf16.mxu0 0
        %852 = vmatpush1.bf16.xpose.msra.mxu0 %v835
        %853 = vmatprep.subr.bf16.mxu0 0
        %854 = vmatpush2.bf16.xpose.msra.mxu0 0
        %855 = vmatprep.subr.bf16.mxu0 0
        %856 = vmatpush2.bf16.xpose.msra.mxu0 0
        %857 = vmatprep.subr.bf16.mxu0 0
        %858 = vmatpush2.bf16.xpose.msra.mxu0 0
        %859 = vmatprep.subr.bf16.mxu0 0
        %860 = vmatpush2.bf16.xpose.msra.mxu0 0
        %861 = vmatprep.subr.bf16.mxu0 0
        %862 = vmatpush2.bf16.xpose.msra.mxu0 0
        %863 = vmatprep.subr.bf16.mxu0 0
        %864 = vmatpush2.bf16.xpose.msra.mxu0 0
        %865 = vmatprep.subr.bf16.mxu0 0
        %866 = vmatpush2.bf16.xpose.msra.mxu0 0
        %867 = vmatprep.subr.bf16.mxu0 0
        %868 = vmatpush2.bf16.xpose.msra.mxu0 0
        %869 = vmatprep.mubr.bf16.mxu0 0
        %870 = vmatmul.mubr.bf16.gmra.mxu0 %v832
        %v871 = vpop.f32.mrf.mxu0
        %v872 = vadd.f32 0.0, %v871
        %v873 = vpop.f32.mrf.mxu0
        %v874 = vpop.f32.mrf.mxu0
        %v875 = vpop.f32.mrf.mxu0
        %876 = vdwg.mxu0
        %v878 = vsel %vm784, %v765, 0
        %v881 = vsel %vm784, %v773, 0
        %883 = vmatprep.subr.bf16.mxu0 0
        %884 = vmatpush1.bf16.xpose.msra.mxu0 0
        %885 = vmatprep.subr.bf16.mxu0 0
        %886 = vmatpush1.bf16.xpose.msra.mxu0 0
        %887 = vmatprep.subr.bf16.mxu0 0
        %888 = vmatpush1.bf16.xpose.msra.mxu0 0
        %889 = vmatprep.subr.bf16.mxu0 0
        %890 = vmatpush1.bf16.xpose.msra.mxu0 0
        %891 = vmatprep.subr.bf16.mxu0 0
        %892 = vmatpush1.bf16.xpose.msra.mxu0 0
        %893 = vmatprep.subr.bf16.mxu0 0
        %894 = vmatpush1.bf16.xpose.msra.mxu0 0
        %895 = vmatprep.subr.bf16.mxu0 0
        %896 = vmatpush1.bf16.xpose.msra.mxu0 0
        %897 = vmatprep.subr.bf16.mxu0 0
        %898 = vmatpush1.bf16.xpose.msra.mxu0 %v881
        %899 = vmatprep.subr.bf16.mxu0 0
        %900 = vmatpush2.bf16.xpose.msra.mxu0 0
        %901 = vmatprep.subr.bf16.mxu0 0
        %902 = vmatpush2.bf16.xpose.msra.mxu0 0
        %903 = vmatprep.subr.bf16.mxu0 0
        %904 = vmatpush2.bf16.xpose.msra.mxu0 0
        %905 = vmatprep.subr.bf16.mxu0 0
        %906 = vmatpush2.bf16.xpose.msra.mxu0 0
        %907 = vmatprep.subr.bf16.mxu0 0
        %908 = vmatpush2.bf16.xpose.msra.mxu0 0
        %909 = vmatprep.subr.bf16.mxu0 0
        %910 = vmatpush2.bf16.xpose.msra.mxu0 0
        %911 = vmatprep.subr.bf16.mxu0 0
        %912 = vmatpush2.bf16.xpose.msra.mxu0 0
        %913 = vmatprep.subr.bf16.mxu0 0
        %914 = vmatpush2.bf16.xpose.msra.mxu0 0
        %915 = vmatprep.mubr.bf16.mxu0 0
        %916 = vmatmul.mubr.bf16.gmra.mxu0 %v878
        %v917 = vpop.f32.mrf.mxu0
        %v918 = vadd.f32 0.0, %v917
        %v919 = vpop.f32.mrf.mxu0
        %v920 = vpop.f32.mrf.mxu0
        %v921 = vpop.f32.mrf.mxu0
        %922 = vdwg.mxu0
        %v924 = vsel %vm784, %v767, 0
        %v927 = vsel %vm784, %v775, 0
        %929 = vmatprep.subr.bf16.mxu0 0
        %930 = vmatpush1.bf16.xpose.msra.mxu0 0
        %931 = vmatprep.subr.bf16.mxu0 0
        %932 = vmatpush1.bf16.xpose.msra.mxu0 0
        %933 = vmatprep.subr.bf16.mxu0 0
        %934 = vmatpush1.bf16.xpose.msra.mxu0 0
        %935 = vmatprep.subr.bf16.mxu0 0
        %936 = vmatpush1.bf16.xpose.msra.mxu0 0
        %937 = vmatprep.subr.bf16.mxu0 0
        %938 = vmatpush1.bf16.xpose.msra.mxu0 0
        %939 = vmatprep.subr.bf16.mxu0 0
        %940 = vmatpush1.bf16.xpose.msra.mxu0 0
        %941 = vmatprep.subr.bf16.mxu0 0
        %942 = vmatpush1.bf16.xpose.msra.mxu0 0
        %943 = vmatprep.subr.bf16.mxu0 0
        %944 = vmatpush1.bf16.xpose.msra.mxu0 %v927
        %945 = vmatprep.subr.bf16.mxu0 0
        %946 = vmatpush2.bf16.xpose.msra.mxu0 0
        %947 = vmatprep.subr.bf16.mxu0 0
        %948 = vmatpush2.bf16.xpose.msra.mxu0 0
        %949 = vmatprep.subr.bf16.mxu0 0
        %950 = vmatpush2.bf16.xpose.msra.mxu0 0
        %951 = vmatprep.subr.bf16.mxu0 0
        %952 = vmatpush2.bf16.xpose.msra.mxu0 0
        %953 = vmatprep.subr.bf16.mxu0 0
        %954 = vmatpush2.bf16.xpose.msra.mxu0 0
        %955 = vmatprep.subr.bf16.mxu0 0
        %956 = vmatpush2.bf16.xpose.msra.mxu0 0
        %957 = vmatprep.subr.bf16.mxu0 0
        %958 = vmatpush2.bf16.xpose.msra.mxu0 0
        %959 = vmatprep.subr.bf16.mxu0 0
        %960 = vmatpush2.bf16.xpose.msra.mxu0 0
        %961 = vmatprep.mubr.bf16.mxu0 0
        %962 = vmatmul.mubr.bf16.gmra.mxu0 %v924
        %v963 = vpop.f32.mrf.mxu0
        %v964 = vadd.f32 0.0, %v963
        %v965 = vpop.f32.mrf.mxu0
        %v966 = vpop.f32.mrf.mxu0
        %v967 = vpop.f32.mrf.mxu0
        %968 = vdwg.mxu0
        %v969 = vmul.f32 %v826, 0.35355338
        %v970 = vmul.f32 %v872, 0.35355338
        %v971 = vmul.f32 %v918, 0.35355338
        %v972 = vmul.f32 %v964, 0.35355338
        %v973 = vsel %vm784, %v969, -inf
        %974 = vmax.xlane.f32.xlu0 %v973
        %v975 = vpop.xlane.xlu0 %974
        %v976 = vsel %vm784, %v970, -inf
        %977 = vmax.xlane.f32.xlu0 %v976
        %v978 = vpop.xlane.xlu0 %977
        %v979 = vsel %vm784, %v971, -inf
        %980 = vmax.xlane.f32.xlu0 %v979
        %v981 = vpop.xlane.xlu0 %980
        %v982 = vsel %vm784, %v972, -inf
        %983 = vmax.xlane.f32.xlu0 %v982
        %v984 = vpop.xlane.xlu0 %983
        %v985 = vsub.f32 %v969, %v975
        %v986 = vsub.f32 %v970, %v978
        %v987 = vsub.f32 %v971, %v981
        %v988 = vsub.f32 %v972, %v984
        %v989 = vmul.f32 %v985, 1.442695
        %v990 = vpow.pop %v989
        %v991 = vmul.f32 %v986, 1.442695
        %v992 = vpow.pop %v991
        %v993 = vmul.f32 %v987, 1.442695
        %v994 = vpow.pop %v993
        %v995 = vmul.f32 %v988, 1.442695
        %v996 = vpow.pop %v995
        %v997 = vsel %vm784, %v990, 0.0
        %998 = vadd.xlane.f32.xlu0 %v997
        %v999 = vpop.xlane.xlu0 %998
        %v1000 = vsel %vm784, %v992, 0.0
        %1001 = vadd.xlane.f32.xlu0 %v1000
        %v1002 = vpop.xlane.xlu0 %1001
        %v1003 = vsel %vm784, %v994, 0.0
        %1004 = vadd.xlane.f32.xlu0 %v1003
        %v1005 = vpop.xlane.xlu0 %1004
        %v1006 = vsel %vm784, %v996, 0.0
        %1007 = vadd.xlane.f32.xlu0 %v1006
        %v1008 = vpop.xlane.xlu0 %1007
        %v1009 = vrcp.pop %v999
        %v1010 = vrcp.pop %v1002
        %v1011 = vrcp.pop %v1005
        %v1012 = vrcp.pop %v1008
        %v1013 = vmul.f32 %v990, %v1009
        %v1014 = vmul.f32 %v992, %v1010
        %v1015 = vmul.f32 %v994, %v1011
        %v1016 = vmul.f32 %v996, %v1012
        %v1017 = vpack.c.bf16 %v1013, %v1013
        %v1018 = vpack.c.bf16 %v1014, %v1014
        %v1019 = vpack.c.bf16 %v1015, %v1015
        %v1020 = vpack.c.bf16 %v1016, %v1016
        %v1022 = vsel %vm784, %v1017, 0
        %vm1024 = vcmask 1043456
        %v1026 = vsel %vm1024, %v776, 0
        %1028 = vmatprep.subr.bf16.mxu0 0
        %1029 = vmatpush1.bf16.msra.mxu0 0
        %1030 = vmatprep.subr.bf16.mxu0 0
        %1031 = vmatpush1.bf16.msra.mxu0 0
        %1032 = vmatprep.subr.bf16.mxu0 0
        %1033 = vmatpush1.bf16.msra.mxu0 0
        %1034 = vmatprep.subr.bf16.mxu0 0
        %1035 = vmatpush1.bf16.msra.mxu0 0
        %1036 = vmatprep.subr.bf16.mxu0 0
        %1037 = vmatpush1.bf16.msra.mxu0 0
        %1038 = vmatprep.subr.bf16.mxu0 0
        %1039 = vmatpush1.bf16.msra.mxu0 0
        %1040 = vmatprep.subr.bf16.mxu0 0
        %1041 = vmatpush1.bf16.msra.mxu0 0
        %1042 = vmatprep.subr.bf16.mxu0 0
        %1043 = vmatpush1.bf16.msra.mxu0 %v1026
        %1044 = vmatprep.subr.bf16.mxu0 0
        %1045 = vmatpush2.bf16.msra.mxu0 0
        %1046 = vmatprep.subr.bf16.mxu0 0
        %1047 = vmatpush2.bf16.msra.mxu0 0
        %1048 = vmatprep.subr.bf16.mxu0 0
        %1049 = vmatpush2.bf16.msra.mxu0 0
        %1050 = vmatprep.subr.bf16.mxu0 0
        %1051 = vmatpush2.bf16.msra.mxu0 0
        %1052 = vmatprep.subr.bf16.mxu0 0
        %1053 = vmatpush2.bf16.msra.mxu0 0
        %1054 = vmatprep.subr.bf16.mxu0 0
        %1055 = vmatpush2.bf16.msra.mxu0 0
        %1056 = vmatprep.subr.bf16.mxu0 0
        %1057 = vmatpush2.bf16.msra.mxu0 0
        %1058 = vmatprep.subr.bf16.mxu0 0
        %1059 = vmatpush2.bf16.msra.mxu0 0
        %1060 = vmatprep.mubr.bf16.mxu0 0
        %1061 = vmatmul.mubr.bf16.gmra.mxu0 %v1022
        %v1062 = vpop.f32.mrf.mxu0
        %v1063 = vadd.f32 0.0, %v1062
        %v1064 = vpop.f32.mrf.mxu0
        %v1065 = vpop.f32.mrf.mxu0
        %v1066 = vpop.f32.mrf.mxu0
        %1067 = vdwg.mxu0
        %v1069 = vsel %vm784, %v1018, 0
        %v1072 = vsel %vm1024, %v779, 0
        %1074 = vmatprep.subr.bf16.mxu0 0
        %1075 = vmatpush1.bf16.msra.mxu0 0
        %1076 = vmatprep.subr.bf16.mxu0 0
        %1077 = vmatpush1.bf16.msra.mxu0 0
        %1078 = vmatprep.subr.bf16.mxu0 0
        %1079 = vmatpush1.bf16.msra.mxu0 0
        %1080 = vmatprep.subr.bf16.mxu0 0
        %1081 = vmatpush1.bf16.msra.mxu0 0
        %1082 = vmatprep.subr.bf16.mxu0 0
        %1083 = vmatpush1.bf16.msra.mxu0 0
        %1084 = vmatprep.subr.bf16.mxu0 0
        %1085 = vmatpush1.bf16.msra.mxu0 0
        %1086 = vmatprep.subr.bf16.mxu0 0
        %1087 = vmatpush1.bf16.msra.mxu0 0
        %1088 = vmatprep.subr.bf16.mxu0 0
        %1089 = vmatpush1.bf16.msra.mxu0 %v1072
        %1090 = vmatprep.subr.bf16.mxu0 0
        %1091 = vmatpush2.bf16.msra.mxu0 0
        %1092 = vmatprep.subr.bf16.mxu0 0
        %1093 = vmatpush2.bf16.msra.mxu0 0
        %1094 = vmatprep.subr.bf16.mxu0 0
        %1095 = vmatpush2.bf16.msra.mxu0 0
        %1096 = vmatprep.subr.bf16.mxu0 0
        %1097 = vmatpush2.bf16.msra.mxu0 0
        %1098 = vmatprep.subr.bf16.mxu0 0
        %1099 = vmatpush2.bf16.msra.mxu0 0
        %1100 = vmatprep.subr.bf16.mxu0 0
        %1101 = vmatpush2.bf16.msra.mxu0 0
        %1102 = vmatprep.subr.bf16.mxu0 0
        %1103 = vmatpush2.bf16.msra.mxu0 0
        %1104 = vmatprep.subr.bf16.mxu0 0
        %1105 = vmatpush2.bf16.msra.mxu0 0
        %1106 = vmatprep.mubr.bf16.mxu0 0
        %1107 = vmatmul.mubr.bf16.gmra.mxu0 %v1069
        %v1108 = vpop.f32.mrf.mxu0
        %v1109 = vadd.f32 0.0, %v1108
        %v1110 = vpop.f32.mrf.mxu0
        %v1111 = vpop.f32.mrf.mxu0
        %v1112 = vpop.f32.mrf.mxu0
        %1113 = vdwg.mxu0
        %v1115 = vsel %vm784, %v1019, 0
        %v1118 = vsel %vm1024, %v781, 0
        %1120 = vmatprep.subr.bf16.mxu0 0
        %1121 = vmatpush1.bf16.msra.mxu0 0
        %1122 = vmatprep.subr.bf16.mxu0 0
        %1123 = vmatpush1.bf16.msra.mxu0 0
        %1124 = vmatprep.subr.bf16.mxu0 0
        %1125 = vmatpush1.bf16.msra.mxu0 0
        %1126 = vmatprep.subr.bf16.mxu0 0
        %1127 = vmatpush1.bf16.msra.mxu0 0
        %1128 = vmatprep.subr.bf16.mxu0 0
        %1129 = vmatpush1.bf16.msra.mxu0 0
        %1130 = vmatprep.subr.bf16.mxu0 0
        %1131 = vmatpush1.bf16.msra.mxu0 0
        %1132 = vmatprep.subr.bf16.mxu0 0
        %1133 = vmatpush1.bf16.msra.mxu0 0
        %1134 = vmatprep.subr.bf16.mxu0 0
        %1135 = vmatpush1.bf16.msra.mxu0 %v1118
        %1136 = vmatprep.subr.bf16.mxu0 0
        %1137 = vmatpush2.bf16.msra.mxu0 0
        %1138 = vmatprep.subr.bf16.mxu0 0
        %1139 = vmatpush2.bf16.msra.mxu0 0
        %1140 = vmatprep.subr.bf16.mxu0 0
        %1141 = vmatpush2.bf16.msra.mxu0 0
        %1142 = vmatprep.subr.bf16.mxu0 0
        %1143 = vmatpush2.bf16.msra.mxu0 0
        %1144 = vmatprep.subr.bf16.mxu0 0
        %1145 = vmatpush2.bf16.msra.mxu0 0
        %1146 = vmatprep.subr.bf16.mxu0 0
        %1147 = vmatpush2.bf16.msra.mxu0 0
        %1148 = vmatprep.subr.bf16.mxu0 0
        %1149 = vmatpush2.bf16.msra.mxu0 0
        %1150 = vmatprep.subr.bf16.mxu0 0
        %1151 = vmatpush2.bf16.msra.mxu0 0
        %1152 = vmatprep.mubr.bf16.mxu0 0
        %1153 = vmatmul.mubr.bf16.gmra.mxu0 %v1115
        %v1154 = vpop.f32.mrf.mxu0
        %v1155 = vadd.f32 0.0, %v1154
        %v1156 = vpop.f32.mrf.mxu0
        %v1157 = vpop.f32.mrf.mxu0
        %v1158 = vpop.f32.mrf.mxu0
        %1159 = vdwg.mxu0
        %v1161 = vsel %vm784, %v1020, 0
        %v1164 = vsel %vm1024, %v783, 0
        %1166 = vmatprep.subr.bf16.mxu0 0
        %1167 = vmatpush1.bf16.msra.mxu0 0
        %1168 = vmatprep.subr.bf16.mxu0 0
        %1169 = vmatpush1.bf16.msra.mxu0 0
        %1170 = vmatprep.subr.bf16.mxu0 0
        %1171 = vmatpush1.bf16.msra.mxu0 0
        %1172 = vmatprep.subr.bf16.mxu0 0
        %1173 = vmatpush1.bf16.msra.mxu0 0
        %1174 = vmatprep.subr.bf16.mxu0 0
        %1175 = vmatpush1.bf16.msra.mxu0 0
        %1176 = vmatprep.subr.bf16.mxu0 0
        %1177 = vmatpush1.bf16.msra.mxu0 0
        %1178 = vmatprep.subr.bf16.mxu0 0
        %1179 = vmatpush1.bf16.msra.mxu0 0
        %1180 = vmatprep.subr.bf16.mxu0 0
        %1181 = vmatpush1.bf16.msra.mxu0 %v1164
        %1182 = vmatprep.subr.bf16.mxu0 0
        %1183 = vmatpush2.bf16.msra.mxu0 0
        %1184 = vmatprep.subr.bf16.mxu0 0
        %1185 = vmatpush2.bf16.msra.mxu0 0
        %1186 = vmatprep.subr.bf16.mxu0 0
        %1187 = vmatpush2.bf16.msra.mxu0 0
        %1188 = vmatprep.subr.bf16.mxu0 0
        %1189 = vmatpush2.bf16.msra.mxu0 0
        %1190 = vmatprep.subr.bf16.mxu0 0
        %1191 = vmatpush2.bf16.msra.mxu0 0
        %1192 = vmatprep.subr.bf16.mxu0 0
        %1193 = vmatpush2.bf16.msra.mxu0 0
        %1194 = vmatprep.subr.bf16.mxu0 0
        %1195 = vmatpush2.bf16.msra.mxu0 0
        %1196 = vmatprep.subr.bf16.mxu0 0
        %1197 = vmatpush2.bf16.msra.mxu0 0
        %1198 = vmatprep.mubr.bf16.mxu0 0
        %1199 = vmatmul.mubr.bf16.gmra.mxu0 %v1161
        %v1200 = vpop.f32.mrf.mxu0
        %v1201 = vadd.f32 0.0, %v1200
        %v1202 = vpop.f32.mrf.mxu0
        %v1203 = vpop.f32.mrf.mxu0
        %v1204 = vpop.f32.mrf.mxu0
        %1205 = vdwg.mxu0
        %1206 = vst.msk [vmem:[#allocation2] sm:$0xff] %vm784, %v1063
        %1208 = vrot.lane.b32.xlu0 %v1109, 8
        %v1209 = vpop.permute.xlu0 %1208
        %vm1211 = vcmask 130112
        %1212 = vst.msk [vmem:[#allocation2] sm:$0xff] %vm1211, %v1209
        %1214 = vrot.lane.b32.xlu0 %v1155, 16
        %v1215 = vpop.permute.xlu0 %1214
        %vm1217 = vcmask 195712
        %1218 = vst.msk [vmem:[#allocation2] sm:$0xff] %vm1217, %v1215
        %1220 = vrot.lane.b32.xlu0 %v1201, 24
        %v1221 = vpop.permute.xlu0 %1220
        %vm1223 = vcmask 261312
        %1224 = vst.msk [vmem:[#allocation2] sm:$0xff] %vm1223, %v1221
        %v1225 = vld [vmem:[#allocation2] sm:$0xff]
        %v1226 = vadd.f32 %v577, %v1225
        %v1227 = vld [vmem:[#allocation6] sm:$0x1]
        %v1228 = vld [vmem:[#allocation8] sm:$0x1]
        %v1229 = vsel %vm521, %v1226, 0.0
        %1230 = vadd.xlane.f32.xlu0 %v1229
        %v1231 = vpop.xlane.xlu0 %1230
        %v1232 = vmul.f32 %v1231, %v531
        %v1233 = vsub.f32 %v1226, %v1232
        %v1234 = vmul.f32 %v1233, %v1233
        %v1235 = vsel %vm521, %v1234, 0.0
        %1236 = vadd.xlane.f32.xlu0 %v1235
        %v1237 = vpop.xlane.xlu0 %1236
        %v1238 = vmul.f32 %v1237, %v531
        %v1239 = vadd.f32 %v1238, 1e-05
        %v1240 = vrsqrt.pop %v1239
        %v1241 = vmul.f32 %v1233, %v1240
        %v1243 = vlaneseq
        %v1244 = vshrl.u32 %v1243, 7
        %v1245 = vsub.s32 0, %v1244
        %v1246 = vrot.slane %v1227, %v1245
        %v1248 = vmul.f32 %v1241, %v1246
        %v1250 = vlaneseq
        %v1251 = vshrl.u32 %v1250, 7
        %v1252 = vsub.s32 0, %v1251
        %v1253 = vrot.slane %v1228, %v1252
        %v1255 = vadd.f32 %v1248, %v1253
        %v1256 = vpack.c.bf16 %v1255, %v1255
        %v1257 = vld [vmem:[#allocation9] sm:$0xf]
        %v1258 = vld [vmem:[#allocation9 + $0x4] sm:$0xf]
        %v1259 = vld [vmem:[#allocation9 + $0x8] sm:$0xf]
        %v1260 = vld [vmem:[#allocation9 + $0xc] sm:$0xf]
        %v1261 = vld [vmem:[#allocation11] sm:$0x1]
        %v1263 = vlaneseq
        %v1264 = vshrl.u32 %v1263, 7
        %v1265 = vsub.s32 0, %v1264
        %v1266 = vrot.slane %v1261, %v1265
        %v1272 = vunpack.c.l.b16 %v1257
        %v1273 = vunpack.c.l.b16 %v1258
        %v1274 = vunpack.c.l.b16 %v1259
        %v1275 = vunpack.c.l.b16 %v1260
        %v1276 = vpack.c.b16 %v1273, %v1272
        %v1277 = vpack.c.b16 %v1275, %v1274
        %v1281 = vsel %vm521, %v1256, 0
        %1283 = vmatprep.subr.bf16.mxu0 0
        %1284 = vmatpush1.bf16.msra.mxu0 0
        %1285 = vmatprep.subr.bf16.mxu0 0
        %1286 = vmatpush1.bf16.msra.mxu0 0
        %1287 = vmatprep.subr.bf16.mxu0 0
        %1288 = vmatpush1.bf16.msra.mxu0 0
        %1289 = vmatprep.subr.bf16.mxu0 0
        %1290 = vmatpush1.bf16.msra.mxu0 0
        %1291 = vmatprep.subr.bf16.mxu0 0
        %1292 = vmatpush1.bf16.msra.mxu0 0
        %1293 = vmatprep.subr.bf16.mxu0 0
        %1294 = vmatpush1.bf16.msra.mxu0 0
        %1295 = vmatprep.subr.bf16.mxu0 0
        %1296 = vmatpush1.bf16.msra.mxu0 %v1277
        %1297 = vmatprep.subr.bf16.mxu0 0
        %1298 = vmatpush1.bf16.msra.mxu0 %v1276
        %1299 = vmatprep.subr.bf16.mxu0 0
        %1300 = vmatpush2.bf16.msra.mxu0 0
        %1301 = vmatprep.subr.bf16.mxu0 0
        %1302 = vmatpush2.bf16.msra.mxu0 0
        %1303 = vmatprep.subr.bf16.mxu0 0
        %1304 = vmatpush2.bf16.msra.mxu0 0
        %1305 = vmatprep.subr.bf16.mxu0 0
        %1306 = vmatpush2.bf16.msra.mxu0 0
        %1307 = vmatprep.subr.bf16.mxu0 0
        %1308 = vmatpush2.bf16.msra.mxu0 0
        %1309 = vmatprep.subr.bf16.mxu0 0
        %1310 = vmatpush2.bf16.msra.mxu0 0
        %1311 = vmatprep.subr.bf16.mxu0 0
        %1312 = vmatpush2.bf16.msra.mxu0 0
        %1313 = vmatprep.subr.bf16.mxu0 0
        %1314 = vmatpush2.bf16.msra.mxu0 0
        %1315 = vmatprep.mubr.bf16.mxu0 0
        %1316 = vmatmul.mubr.bf16.gmra.mxu0 %v1281
        %v1317 = vpop.f32.mrf.mxu0
        %v1318 = vadd.f32 %v1266, %v1317
        %v1319 = vpop.f32.mrf.mxu0
        %v1320 = vpop.f32.mrf.mxu0
        %v1321 = vpop.f32.mrf.mxu0
        %1322 = vdwg.mxu0
        %v1323 = vmul.f32 %v1318, 0.5
        %v1324 = vmul.f32 %v1318, 0.044715
        %v1325 = vmul.f32 %v1324, %v1318
        %v1326 = vmul.f32 %v1325, %v1318
        %v1327 = vadd.f32 %v1318, %v1326
        %v1328 = vmul.f32 %v1327, 0.7978846
        %v1329 = vtanh.pop %v1328
        %v1330 = vadd.f32 %v1329, 1.0
        %v1331 = vmul.f32 %v1323, %v1330
        %v1332 = vpack.c.bf16 %v1331, %v1331
        %v1333 = vld [vmem:[%s10] sm:$0xf]
        %v1334 = vld [vmem:[%s10 + $0x4] sm:$0xf]
        %v1335 = vld [vmem:[%s10 + $0x8] sm:$0xf]
        %v1336 = vld [vmem:[%s10 + $0xc] sm:$0xf]
        %v1337 = vld [vmem:[%s10 + $0x10] sm:$0xf]
        %v1338 = vld [vmem:[%s10 + $0x14] sm:$0xf]
        %v1339 = vld [vmem:[%s10 + $0x18] sm:$0xf]
        %v1340 = vld [vmem:[%s10 + $0x1c] sm:$0xf]
        %v1341 = vld [vmem:[%s10 + $0x20] sm:$0xf]
        %v1342 = vld [vmem:[%s10 + $0x24] sm:$0xf]
        %v1343 = vld [vmem:[%s10 + $0x28] sm:$0xf]
        %v1344 = vld [vmem:[%s10 + $0x2c] sm:$0xf]
        %v1345 = vld [vmem:[%s10 + $0x30] sm:$0xf]
        %v1346 = vld [vmem:[%s10 + $0x34] sm:$0xf]
        %v1347 = vld [vmem:[%s10 + $0x38] sm:$0xf]
        %v1348 = vld [vmem:[%s10 + $0x3c] sm:$0xf]
        %v1349 = vld [vmem:[%s11] sm:$0x1]
        %v1351 = vlaneseq
        %v1352 = vshrl.u32 %v1351, 7
        %v1353 = vsub.s32 0, %v1352
        %v1354 = vrot.slane %v1349, %v1353
        %v1372 = vunpack.c.l.b16 %v1333
        %v1373 = vunpack.c.l.b16 %v1334
        %v1374 = vunpack.c.l.b16 %v1335
        %v1375 = vunpack.c.l.b16 %v1336
        %v1376 = vunpack.c.l.b16 %v1337
        %v1377 = vunpack.c.l.b16 %v1338
        %v1378 = vunpack.c.l.b16 %v1339
        %v1379 = vunpack.c.l.b16 %v1340
        %v1380 = vunpack.c.l.b16 %v1341
        %v1381 = vunpack.c.l.b16 %v1342
        %v1382 = vunpack.c.l.b16 %v1343
        %v1383 = vunpack.c.l.b16 %v1344
        %v1384 = vunpack.c.l.b16 %v1345
        %v1385 = vunpack.c.l.b16 %v1346
        %v1386 = vunpack.c.l.b16 %v1347
        %v1387 = vunpack.c.l.b16 %v1348
        %v1388 = vpack.c.b16 %v1373, %v1372
        %v1389 = vpack.c.b16 %v1375, %v1374
        %v1390 = vpack.c.b16 %v1377, %v1376
        %v1391 = vpack.c.b16 %v1379, %v1378
        %v1392 = vpack.c.b16 %v1381, %v1380
        %v1393 = vpack.c.b16 %v1383, %v1382
        %v1394 = vpack.c.b16 %v1385, %v1384
        %v1395 = vpack.c.b16 %v1387, %v1386
        %1404 = vmatprep.subr.bf16.mxu0 0
        %1405 = vmatpush1.bf16.msra.mxu0 %v1395
        %1406 = vmatprep.subr.bf16.mxu0 0
        %1407 = vmatpush1.bf16.msra.mxu0 %v1394
        %1408 = vmatprep.subr.bf16.mxu0 0
        %1409 = vmatpush1.bf16.msra.mxu0 %v1393
        %1410 = vmatprep.subr.bf16.mxu0 0
        %1411 = vmatpush1.bf16.msra.mxu0 %v1392
        %1412 = vmatprep.subr.bf16.mxu0 0
        %1413 = vmatpush1.bf16.msra.mxu0 %v1391
        %1414 = vmatprep.subr.bf16.mxu0 0
        %1415 = vmatpush1.bf16.msra.mxu0 %v1390
        %1416 = vmatprep.subr.bf16.mxu0 0
        %1417 = vmatpush1.bf16.msra.mxu0 %v1389
        %1418 = vmatprep.subr.bf16.mxu0 0
        %1419 = vmatpush1.bf16.msra.mxu0 %v1388
        %1420 = vmatprep.subr.bf16.mxu0 0
        %1421 = vmatpush2.bf16.msra.mxu0 0
        %1422 = vmatprep.subr.bf16.mxu0 0
        %1423 = vmatpush2.bf16.msra.mxu0 0
        %1424 = vmatprep.subr.bf16.mxu0 0
        %1425 = vmatpush2.bf16.msra.mxu0 0
        %1426 = vmatprep.subr.bf16.mxu0 0
        %1427 = vmatpush2.bf16.msra.mxu0 0
        %1428 = vmatprep.subr.bf16.mxu0 0
        %1429 = vmatpush2.bf16.msra.mxu0 0
        %1430 = vmatprep.subr.bf16.mxu0 0
        %1431 = vmatpush2.bf16.msra.mxu0 0
        %1432 = vmatprep.subr.bf16.mxu0 0
        %1433 = vmatpush2.bf16.msra.mxu0 0
        %1434 = vmatprep.subr.bf16.mxu0 0
        %1435 = vmatpush2.bf16.msra.mxu0 0
        %1436 = vmatprep.mubr.bf16.mxu0 0
        %1437 = vmatmul.mubr.bf16.gmra.mxu0 %v1332
        %v1438 = vpop.f32.mrf.mxu0
        %v1439 = vadd.f32 %v1354, %v1438
        %v1440 = vpop.f32.mrf.mxu0
        %v1441 = vpop.f32.mrf.mxu0
        %v1442 = vpop.f32.mrf.mxu0
        %1443 = vdwg.mxu0
        %v1444 = vadd.f32 %v1226, %v1439
        %1445 = vst.msk [vmem:[%s506] sm:$0xff] %vm521, %v1444
        %s1446 = sand.u32 %s306, 1
        %s1447 = scalar_lea.sflag [#allocation5], %s1446
        %s1448 = sand.u32 %s306, 1
        %s1449 = smul.addr %s1448, 8
        %s1450 = scalar_lea.vmem [#allocation12], %s1449
        // Predicated region
        $region89: #{tpu_custom_call.1} parent=67 // pred_check
          %p1451 = pneg %p316
        $region90: #{tpu_custom_call.1} parent=67 // pred_check_branch
          %1453 = sbr.rel (%p1451) target = $region92
        $region91: #{tpu_custom_call.1} parent=67 // pred_region
          %s1455 = ssub.s32 128, 128
          %1456 = vsyncadd %s1447, %s1455
          %s1457 = smul.addr %s31, 128
          %s1458 = scalar_lea.hbm %s12, %s1457
          %s1460 = sshll.u32 %s1450, 4
          %s1461 = int_to_ptr.vmem [resolvable:$true] %s1460
          %1463 = dma.vmem_to_hbm [thread:$0]  %s1461, 128, %s1458, %s1447
        $region92: #{tpu_custom_call.1} parent=67 // pred_fallthru
          _
      $region68: #{tpu_custom_call.1} parent=5 // pred_fallthru
        _
      %p1464 = scmp.le.s32.totalorder 2, %s26
      // Predicated region
      $region93: #{tpu_custom_call.1} parent=5 // pred_check
        %p1465 = pneg %p1464
      $region94: #{tpu_custom_call.1} parent=5 // pred_check_branch
        %1467 = sbr.rel (%p1465) target = $region96
      $region95: #{tpu_custom_call.1} parent=5 // pred_region
        %s1468 = ssub.s32 %s26, 2
        // Predicated region
        $region97: #{tpu_custom_call.1} parent=95 // pred_check
          %p1469 = pneg %p322
        $region98: #{tpu_custom_call.1} parent=95 // pred_check_branch
          %1471 = sbr.rel (%p1469) target = $region100
        $region99: #{tpu_custom_call.1} parent=95 // pred_region
          %s1472 = sand.u32 %s307, 1
          %s1473 = scalar_lea.sflag [#allocation5], %s1472
          %s1474 = sand.u32 %s307, 1
          %s1475 = smul.addr %s1474, 8
          %s1476 = scalar_lea.vmem [#allocation12], %s1475
          %1477 = dma.done %s1473, 128
        $region100: #{tpu_custom_call.1} parent=95 // pred_fallthru
          _
      $region96: #{tpu_custom_call.1} parent=5 // pred_fallthru
        _
    $region6: #{tpu_custom_call.1} parent=1 // loop_footer
      %s30 = sadd.s32 1, %s26
    $region7: #{tpu_custom_call.1} parent=1 // loop_footer_branch
      %25 = sbr.rel target = $region3
    $region8: #{tpu_custom_call.1} parent=1 // loop_exit
      _
    %1478 = vsyncpa [#allocation4], 1
    %s1479 = scalar_lea.sflag [#allocation4], 1
    %1480 = vsyncpa %s1479, 1
    %1481 = vsyncpa [#allocation7], 1
    %1482 = vsyncpa [#allocation10], 1
    %1483 = vsyncpa [#allocation5], 1
    %s1484 = scalar_lea.sflag [#allocation5], 1
    %1485 = vsyncpa %s1484, 1

</llo_original>
